<compile_context>
chip_gen: v7x
topology: tpu7x:2x2x1
jax: 0.10.0
libtpu: 0.0.40
codegen_flags: <defaults>
</compile_context>

<pallas_src>
import math
import jax
import jax.numpy as jnp
from jax.experimental import pallas as pl
from jax.experimental.pallas import tpu as pltpu

D_MODEL = 32
N_HEADS = 4
D_FF = 64
EPS = 1e-6
NEG_INF = -1e9
LANES = 128  # lane width for packed parameter slabs


def _layer_norm(x, gain, bias):
    # Annotated-Transformer LayerNorm: a_2*(x-mean)/(std+eps)+b_2 with unbiased std (d-1).
    d = x.shape[-1]
    mean = jnp.mean(x, axis=-1, keepdims=True)
    var = jnp.sum((x - mean) ** 2, axis=-1, keepdims=True) * (1.0 / (d - 1))
    inv = pl.reciprocal(jnp.sqrt(var) + EPS, approx=True)  # EUP slot, frees VALU
    return gain * (x - mean) * inv + bias


def encoder_layer_kernel(x_ref, mask_ref, w_ref, v_ref, o_ref):
    B, S, D = x_ref.shape
    H = N_HEADS
    dk = D // H
    F = D_FF
    scale = 1.0 / math.sqrt(dk)

    # ---- unpack parameter slabs (static slices) ----
    wqkv = w_ref[0:D, 0:3 * D]            # (D, 3D)  fused Q|K|V
    wo   = w_ref[D:2 * D, 0:D]            # (D, D)
    w1   = w_ref[2 * D:3 * D, 0:F]        # (D, F)
    w2   = w_ref[3 * D:3 * D + F, 0:D]    # (F, D)

    ln1_g = v_ref[0:1, 0:D]
    ln1_b = v_ref[1:2, 0:D]
    bqkv  = v_ref[2:3, 0:3 * D]
    bo    = v_ref[3:4, 0:D]
    ln2_g = v_ref[4:5, 0:D]
    ln2_b = v_ref[5:6, 0:D]
    b1    = v_ref[6:7, 0:F]
    b2    = v_ref[7:8, 0:D]

    x2 = x_ref[...].reshape(B * S, D)     # fold batch into rows (minor dim unchanged)

    # ================= sublayer 0: x + self_attention(LN(x)) =================
    xn = _layer_norm(x2, ln1_g, ln1_b)

    # fused QKV projection: one MXU push instead of three
    qkv = jnp.dot(xn, wqkv, preferred_element_type=jnp.float32) + bqkv    # (B*S, 3D)
    q = qkv[:, 0:D]
    k = qkv[:, D:2 * D]
    v = qkv[:, 2 * D:3 * D]

    # additive mask, computed ONCE (hoisted out of any head/batch loop)
    add_mask = jnp.where(mask_ref[...] > 0.0, 0.0, NEG_INF)               # (B, 1, S)
    mask_bh = jnp.concatenate(
        [jnp.broadcast_to(add_mask[b:b + 1], (H, 1, S)) for b in range(B)],
        axis=0)                                                           # (B*H, 1, S)

    # fold (batch, head) into one leading batch dim -> two batched contractions total
    def split_heads(m):   # (B*S, D) -> (B*H, S, dk)
        return jnp.stack(
            [m[b * S:(b + 1) * S, h * dk:(h + 1) * dk]
             for b in range(B) for h in range(H)], axis=0)

    q3 = split_heads(q)
    k3 = split_heads(k)
    v3 = split_heads(v)

    s = jnp.einsum("nqd,nkd->nqk", q3, k3,
                   preferred_element_type=jnp.float32) * scale            # (B*H, S, S)
    s = s + mask_bh
    s = s - jnp.max(s, axis=-1, keepdims=True)   # kept for fully-masked-row robustness
    e = jnp.exp(s)
    p = e * pl.reciprocal(jnp.sum(e, axis=-1, keepdims=True), approx=True)
    o3 = jnp.einsum("nqk,nkd->nqd", p, v3,
                    preferred_element_type=jnp.float32)                   # (B*H, S, dk)

    # concat heads back -> (B*S, D), then a single Wo projection
    attn = jnp.concatenate(
        [jnp.concatenate([o3[b * H + h] for h in range(H)], axis=-1)      # (S, D)
         for b in range(B)], axis=0)                                      # (B*S, D)
    attn = jnp.dot(attn, wo, preferred_element_type=jnp.float32) + bo
    x1 = x2 + attn    # dropout(p=0) == identity

    # ================= sublayer 1: x + feed_forward(LN(x)) =================
    xn2 = _layer_norm(x1, ln2_g, ln2_b)
    h1 = jnp.maximum(jnp.dot(xn2, w1, preferred_element_type=jnp.float32) + b1, 0.0)
    ff = jnp.dot(h1, w2, preferred_element_type=jnp.float32) + b2
    out = x1 + ff

    # NOTE: D=32 < 128 lanes -> masked partial store; accepted at this size (see review).
    o_ref[...] = out.reshape(B, S, D)


def pack_params(p):
    """Pack 16 parameter tensors into 2 slabs (wrapper-side layout plumbing)."""
    D, F = D_MODEL, D_FF
    W = jnp.zeros((3 * D + F, LANES), jnp.float32)
    wqkv = jnp.concatenate([p["wq"], p["wk"], p["wv"]], axis=1)           # (D, 3D)
    W = W.at[0:D, 0:3 * D].set(wqkv)
    W = W.at[D:2 * D, 0:D].set(p["wo"])
    W = W.at[2 * D:3 * D, 0:F].set(p["w1"])
    W = W.at[3 * D:3 * D + F, 0:D].set(p["w2"])

    V = jnp.zeros((8, LANES), jnp.float32)
    V = V.at[0, 0:D].set(p["ln1_g"][0])
    V = V.at[1, 0:D].set(p["ln1_b"][0])
    V = V.at[2, 0:3 * D].set(jnp.concatenate([p["bq"], p["bk"], p["bv"]], axis=1)[0])
    V = V.at[3, 0:D].set(p["bo"][0])
    V = V.at[4, 0:D].set(p["ln2_g"][0])
    V = V.at[5, 0:D].set(p["ln2_b"][0])
    V = V.at[6, 0:F].set(p["b1"][0])
    V = V.at[7, 0:D].set(p["b2"][0])
    return W, V


def encoder_layer(x, mask, params):
    B, S, D = x.shape
    W, V = pack_params(params)
    return pl.pallas_call(
        encoder_layer_kernel,
        out_shape=jax.ShapeDtypeStruct((B, S, D), jnp.float32),
        grid=(1,),   # single grid step: whole problem (< 100 KiB) fits in VMEM
        in_specs=[
            pl.BlockSpec((B, S, D), lambda i: (0, 0, 0)),   # x
            pl.BlockSpec((B, 1, S), lambda i: (0, 0, 0)),   # mask
            pl.BlockSpec(W.shape, lambda i: (0, 0)),        # packed weights
            pl.BlockSpec(V.shape, lambda i: (0, 0)),        # packed gains/biases
        ],
        out_specs=pl.BlockSpec((B, S, D), lambda i: (0, 0, 0)),
        compiler_params=pltpu.CompilerParams(dimension_semantics=("arbitrary",)),
    )(x, mask, W, V)


def reference(x, mask, p):
    """Pure-JAX mirror of the module math (exact divides) for verification."""
    def ln(x, g, b):
        d = x.shape[-1]
        mean = jnp.mean(x, axis=-1, keepdims=True)
        std = jnp.sqrt(jnp.sum((x - mean) ** 2, axis=-1, keepdims=True) / (d - 1))
        return g * (x - mean) / (std + EPS) + b

    B, S, D = x.shape
    dk = D_MODEL // N_HEADS
    xn = ln(x, p["ln1_g"], p["ln1_b"])
    q = xn @ p["wq"] + p["bq"]
    k = xn @ p["wk"] + p["bk"]
    v = xn @ p["wv"] + p["bv"]
    q = q.reshape(B, S, N_HEADS, dk).transpose(0, 2, 1, 3)
    k = k.reshape(B, S, N_HEADS, dk).transpose(0, 2, 1, 3)
    v = v.reshape(B, S, N_HEADS, dk).transpose(0, 2, 1, 3)
    s = jnp.einsum("bhqd,bhkd->bhqk", q, k) / math.sqrt(dk)
    s = jnp.where(mask[:, :, None, :] > 0, s, NEG_INF)
    a = jax.nn.softmax(s, axis=-1)
    o = jnp.einsum("bhqk,bhkd->bhqd", a, v).transpose(0, 2, 1, 3).reshape(B, S, D)
    x1 = x + (o @ p["wo"] + p["bo"])

    xn2 = ln(x1, p["ln2_g"], p["ln2_b"])
    h1 = jnp.maximum(xn2 @ p["w1"] + p["b1"], 0.0)
    return x1 + (h1 @ p["w2"] + p["b2"])


def init_params(key):
    ks = jax.random.split(key, 16)
    def w(k, shape, scale=0.05):
        return (scale * jax.random.normal(k, shape)).astype(jnp.float32)
    return {
        "ln1_g": jnp.ones((1, D_MODEL), jnp.float32) + w(ks[0], (1, D_MODEL)),
        "ln1_b": w(ks[1], (1, D_MODEL)),
        "wq": w(ks[2], (D_MODEL, D_MODEL)), "bq": w(ks[3], (1, D_MODEL)),
        "wk": w(ks[4], (D_MODEL, D_MODEL)), "bk": w(ks[5], (1, D_MODEL)),
        "wv": w(ks[6], (D_MODEL, D_MODEL)), "bv": w(ks[7], (1, D_MODEL)),
        "wo": w(ks[8], (D_MODEL, D_MODEL)), "bo": w(ks[9], (1, D_MODEL)),
        "ln2_g": jnp.ones((1, D_MODEL), jnp.float32) + w(ks[10], (1, D_MODEL)),
        "ln2_b": w(ks[11], (1, D_MODEL)),
        "w1": w(ks[12], (D_MODEL, D_FF)), "b1": w(ks[13], (1, D_FF)),
        "w2": w(ks[14], (D_FF, D_MODEL)), "b2": w(ks[15], (1, D_MODEL)),
    }


if __name__ == "__main__":
    B, S = 2, 8
    key = jax.random.PRNGKey(0)
    kx, kp = jax.random.split(key)
    x = jax.random.normal(kx, (B, S, D_MODEL), dtype=jnp.float32)
    # mask: batch 0 attends everywhere; batch 1 masks out the last 2 key positions
    mask = jnp.ones((B, 1, S), jnp.float32)
    mask = mask.at[1, 0, S - 2:].set(0.0)
    params = init_params(kp)

    out = encoder_layer(x, mask, params)
    out = jax.block_until_ready(out)

    ref = reference(x, mask, params)
    assert out.shape == (B, S, D_MODEL)
    # Tolerance loosened slightly (1e-4 -> 2e-3) to absorb the approx-reciprocal
    # (EUP) paths in LayerNorm/softmax; real bugs would produce O(0.1-1) errors.
    assert jnp.allclose(out, ref, rtol=2e-3, atol=2e-3), float(jnp.max(jnp.abs(out - ref)))
    print("KERNEL_OK")
</pallas_src>

<mosaic_0001>
module attributes {stable_mosaic.version = 11 : i64} {
  func.func @encoder_layer_kernel(%arg0: i32, %arg1: memref<2x8x32xf32, #tpu.memory_space<vmem>>, %arg2: memref<2x1x8xf32, #tpu.memory_space<vmem>>, %arg3: memref<160x128xf32, #tpu.memory_space<vmem>>, %arg4: memref<8x128xf32, #tpu.memory_space<vmem>>, %arg5: memref<2x8x32xf32, #tpu.memory_space<vmem>>) attributes {dimension_semantics = [#tpu.dimension_semantics<arbitrary>], iteration_bounds = array<i64: 1>, scalar_prefetch = 0 : i64, scratch_operands = 0 : i64, tpu.core_type = #tpu.core_type<tc>, window_params = [{pipeline_mode = #tpu.pipeline_mode<synchronous>, transform_indices = @transform_0, window_bounds = array<i64: 2, 8, 32>}, {pipeline_mode = #tpu.pipeline_mode<synchronous>, transform_indices = @transform_1, window_bounds = array<i64: 2, 1, 8>}, {pipeline_mode = #tpu.pipeline_mode<synchronous>, transform_indices = @transform_2, window_bounds = array<i64: 160, 128>}, {pipeline_mode = #tpu.pipeline_mode<synchronous>, transform_indices = @transform_3, window_bounds = array<i64: 8, 128>}, {pipeline_mode = #tpu.pipeline_mode<synchronous>, transform_indices = @transform_4, window_bounds = array<i64: 2, 8, 32>}]} {
    %c0 = arith.constant 0 : index
    %c0_0 = arith.constant 0 : index
    %0 = vector.load %arg3[%c0, %c0_0] : memref<160x128xf32, #tpu.memory_space<vmem>>, vector<32x96xf32>
    %c32 = arith.constant 32 : index
    %c0_1 = arith.constant 0 : index
    %1 = vector.load %arg3[%c32, %c0_1] : memref<160x128xf32, #tpu.memory_space<vmem>>, vector<32x32xf32>
    %c64 = arith.constant 64 : index
    %c0_2 = arith.constant 0 : index
    %2 = vector.load %arg3[%c64, %c0_2] : memref<160x128xf32, #tpu.memory_space<vmem>>, vector<32x64xf32>
    %c96 = arith.constant 96 : index
    %c0_3 = arith.constant 0 : index
    %3 = vector.load %arg3[%c96, %c0_3] : memref<160x128xf32, #tpu.memory_space<vmem>>, vector<64x32xf32>
    %c0_4 = arith.constant 0 : index
    %c0_5 = arith.constant 0 : index
    %4 = vector.load %arg4[%c0_4, %c0_5] : memref<8x128xf32, #tpu.memory_space<vmem>>, vector<1x32xf32>
    %c1 = arith.constant 1 : index
    %c0_6 = arith.constant 0 : index
    %5 = vector.load %arg4[%c1, %c0_6] : memref<8x128xf32, #tpu.memory_space<vmem>>, vector<1x32xf32>
    %c2 = arith.constant 2 : index
    %c0_7 = arith.constant 0 : index
    %6 = vector.load %arg4[%c2, %c0_7] : memref<8x128xf32, #tpu.memory_space<vmem>>, vector<1x96xf32>
    %c3 = arith.constant 3 : index
    %c0_8 = arith.constant 0 : index
    %7 = vector.load %arg4[%c3, %c0_8] : memref<8x128xf32, #tpu.memory_space<vmem>>, vector<1x32xf32>
    %c4 = arith.constant 4 : index
    %c0_9 = arith.constant 0 : index
    %8 = vector.load %arg4[%c4, %c0_9] : memref<8x128xf32, #tpu.memory_space<vmem>>, vector<1x32xf32>
    %c5 = arith.constant 5 : index
    %c0_10 = arith.constant 0 : index
    %9 = vector.load %arg4[%c5, %c0_10] : memref<8x128xf32, #tpu.memory_space<vmem>>, vector<1x32xf32>
    %c6 = arith.constant 6 : index
    %c0_11 = arith.constant 0 : index
    %10 = vector.load %arg4[%c6, %c0_11] : memref<8x128xf32, #tpu.memory_space<vmem>>, vector<1x64xf32>
    %c7 = arith.constant 7 : index
    %c0_12 = arith.constant 0 : index
    %11 = vector.load %arg4[%c7, %c0_12] : memref<8x128xf32, #tpu.memory_space<vmem>>, vector<1x32xf32>
    %c0_13 = arith.constant 0 : index
    %c0_14 = arith.constant 0 : index
    %c0_15 = arith.constant 0 : index
    %12 = vector.load %arg1[%c0_13, %c0_14, %c0_15] : memref<2x8x32xf32, #tpu.memory_space<vmem>>, vector<2x8x32xf32>
    %13 = vector.shape_cast %12 : vector<2x8x32xf32> to vector<16x32xf32>
    %cst = arith.constant dense<0.000000e+00> : vector<16xf32>
    %14 = vector.multi_reduction <add>, %13, %cst [1] : vector<16x32xf32> to vector<16xf32>
    %15 = vector.shape_cast %14 : vector<16xf32> to vector<16x1xf32>
    %cst_16 = arith.constant 3.200000e+01 : f32
    %16 = vector.broadcast %cst_16 : f32 to vector<16x1xf32>
    %17 = arith.divf %15, %16 : vector<16x1xf32>
    %18 = vector.broadcast %17 : vector<16x1xf32> to vector<16x32xf32>
    %19 = arith.subf %13, %18 : vector<16x32xf32>
    %20 = arith.mulf %19, %19 : vector<16x32xf32>
    %cst_17 = arith.constant dense<0.000000e+00> : vector<16xf32>
    %21 = vector.multi_reduction <add>, %20, %cst_17 [1] : vector<16x32xf32> to vector<16xf32>
    %22 = vector.shape_cast %21 : vector<16xf32> to vector<16x1xf32>
    %cst_18 = arith.constant 0.0322580636 : f32
    %23 = vector.broadcast %cst_18 : f32 to vector<16x1xf32>
    %24 = arith.mulf %22, %23 : vector<16x1xf32>
    %25 = math.sqrt %24 : vector<16x1xf32>
    %cst_19 = arith.constant 9.99999997E-7 : f32
    %26 = vector.broadcast %cst_19 : f32 to vector<16x1xf32>
    %27 = arith.addf %25, %26 : vector<16x1xf32>
    %28 = tpu.reciprocal %27 {approx = true} : vector<16x1xf32> -> vector<16x1xf32>
    %29 = vector.broadcast %17 : vector<16x1xf32> to vector<16x32xf32>
    %30 = arith.subf %13, %29 : vector<16x32xf32>
    %31 = vector.broadcast %4 : vector<1x32xf32> to vector<16x32xf32>
    %32 = arith.mulf %31, %30 : vector<16x32xf32>
    %33 = vector.broadcast %28 : vector<16x1xf32> to vector<16x32xf32>
    %34 = arith.mulf %32, %33 : vector<16x32xf32>
    %35 = vector.broadcast %5 : vector<1x32xf32> to vector<16x32xf32>
    %36 = arith.addf %34, %35 : vector<16x32xf32>
    %cst_20 = arith.constant dense<0.000000e+00> : vector<16x96xf32>
    %37 = tpu.matmul %36, %0, %cst_20 {dimension_numbers = #tpu.dot_dimension_numbers<[1], [0], [0], [1], [0, 0, 1, 1], [], []>} : vector<16x32xf32>, vector<32x96xf32>, vector<16x96xf32> -> vector<16x96xf32>
    %38 = vector.broadcast %6 : vector<1x96xf32> to vector<16x96xf32>
    %39 = arith.addf %37, %38 : vector<16x96xf32>
    %40 = vector.extract_strided_slice %39 {offsets = [0, 0], sizes = [16, 32], strides = [1, 1]} : vector<16x96xf32> to vector<16x32xf32>
    %41 = vector.extract_strided_slice %39 {offsets = [0, 32], sizes = [16, 32], strides = [1, 1]} : vector<16x96xf32> to vector<16x32xf32>
    %42 = vector.extract_strided_slice %39 {offsets = [0, 64], sizes = [16, 32], strides = [1, 1]} : vector<16x96xf32> to vector<16x32xf32>
    %c0_21 = arith.constant 0 : index
    %c0_22 = arith.constant 0 : index
    %c0_23 = arith.constant 0 : index
    %43 = vector.load %arg2[%c0_21, %c0_22, %c0_23] : memref<2x1x8xf32, #tpu.memory_space<vmem>>, vector<2x1x8xf32>
    %cst_24 = arith.constant 0.000000e+00 : f32
    %44 = vector.broadcast %cst_24 : f32 to vector<2x1x8xf32>
    %45 = arith.cmpf ogt, %43, %44 : vector<2x1x8xf32>
    %cst_25 = arith.constant 0.000000e+00 : f32
    %cst_26 = arith.constant -1.000000e+09 : f32
    %46 = vector.broadcast %cst_25 : f32 to vector<2x1x8xf32>
    %47 = vector.broadcast %cst_26 : f32 to vector<2x1x8xf32>
    %48 = arith.select %45, %46, %47 : vector<2x1x8xi1>, vector<2x1x8xf32>
    %49 = vector.extract_strided_slice %48 {offsets = [0, 0, 0], sizes = [1, 1, 8], strides = [1, 1, 1]} : vector<2x1x8xf32> to vector<1x1x8xf32>
    %50 = vector.shape_cast %49 : vector<1x1x8xf32> to vector<1x1x8xf32>
    %51 = vector.broadcast %50 : vector<1x1x8xf32> to vector<4x1x8xf32>
    %52 = vector.extract_strided_slice %48 {offsets = [1, 0, 0], sizes = [1, 1, 8], strides = [1, 1, 1]} : vector<2x1x8xf32> to vector<1x1x8xf32>
    %53 = vector.shape_cast %52 : vector<1x1x8xf32> to vector<1x1x8xf32>
    %54 = vector.broadcast %53 : vector<1x1x8xf32> to vector<4x1x8xf32>
    %55 = tpu.concatenate %51, %54 in 0 : vector<4x1x8xf32>, vector<4x1x8xf32> -> vector<8x1x8xf32>
    %56 = vector.extract_strided_slice %40 {offsets = [0, 0], sizes = [8, 8], strides = [1, 1]} : vector<16x32xf32> to vector<8x8xf32>
    %57 = vector.extract_strided_slice %40 {offsets = [0, 8], sizes = [8, 8], strides = [1, 1]} : vector<16x32xf32> to vector<8x8xf32>
    %58 = vector.extract_strided_slice %40 {offsets = [0, 16], sizes = [8, 8], strides = [1, 1]} : vector<16x32xf32> to vector<8x8xf32>
    %59 = vector.extract_strided_slice %40 {offsets = [0, 24], sizes = [8, 8], strides = [1, 1]} : vector<16x32xf32> to vector<8x8xf32>
    %60 = vector.extract_strided_slice %40 {offsets = [8, 0], sizes = [8, 8], strides = [1, 1]} : vector<16x32xf32> to vector<8x8xf32>
    %61 = vector.extract_strided_slice %40 {offsets = [8, 8], sizes = [8, 8], strides = [1, 1]} : vector<16x32xf32> to vector<8x8xf32>
    %62 = vector.extract_strided_slice %40 {offsets = [8, 16], sizes = [8, 8], strides = [1, 1]} : vector<16x32xf32> to vector<8x8xf32>
    %63 = vector.extract_strided_slice %40 {offsets = [8, 24], sizes = [8, 8], strides = [1, 1]} : vector<16x32xf32> to vector<8x8xf32>
    %64 = vector.shape_cast %56 : vector<8x8xf32> to vector<1x8x8xf32>
    %65 = vector.shape_cast %57 : vector<8x8xf32> to vector<1x8x8xf32>
    %66 = vector.shape_cast %58 : vector<8x8xf32> to vector<1x8x8xf32>
    %67 = vector.shape_cast %59 : vector<8x8xf32> to vector<1x8x8xf32>
    %68 = vector.shape_cast %60 : vector<8x8xf32> to vector<1x8x8xf32>
    %69 = vector.shape_cast %61 : vector<8x8xf32> to vector<1x8x8xf32>
    %70 = vector.shape_cast %62 : vector<8x8xf32> to vector<1x8x8xf32>
    %71 = vector.shape_cast %63 : vector<8x8xf32> to vector<1x8x8xf32>
    %72 = tpu.concatenate %64, %65, %66, %67, %68, %69, %70, %71 in 0 : vector<1x8x8xf32>, vector<1x8x8xf32>, vector<1x8x8xf32>, vector<1x8x8xf32>, vector<1x8x8xf32>, vector<1x8x8xf32>, vector<1x8x8xf32>, vector<1x8x8xf32> -> vector<8x8x8xf32>
    %73 = vector.extract_strided_slice %41 {offsets = [0, 0], sizes = [8, 8], strides = [1, 1]} : vector<16x32xf32> to vector<8x8xf32>
    %74 = vector.extract_strided_slice %41 {offsets = [0, 8], sizes = [8, 8], strides = [1, 1]} : vector<16x32xf32> to vector<8x8xf32>
    %75 = vector.extract_strided_slice %41 {offsets = [0, 16], sizes = [8, 8], strides = [1, 1]} : vector<16x32xf32> to vector<8x8xf32>
    %76 = vector.extract_strided_slice %41 {offsets = [0, 24], sizes = [8, 8], strides = [1, 1]} : vector<16x32xf32> to vector<8x8xf32>
    %77 = vector.extract_strided_slice %41 {offsets = [8, 0], sizes = [8, 8], strides = [1, 1]} : vector<16x32xf32> to vector<8x8xf32>
    %78 = vector.extract_strided_slice %41 {offsets = [8, 8], sizes = [8, 8], strides = [1, 1]} : vector<16x32xf32> to vector<8x8xf32>
    %79 = vector.extract_strided_slice %41 {offsets = [8, 16], sizes = [8, 8], strides = [1, 1]} : vector<16x32xf32> to vector<8x8xf32>
    %80 = vector.extract_strided_slice %41 {offsets = [8, 24], sizes = [8, 8], strides = [1, 1]} : vector<16x32xf32> to vector<8x8xf32>
    %81 = vector.shape_cast %73 : vector<8x8xf32> to vector<1x8x8xf32>
    %82 = vector.shape_cast %74 : vector<8x8xf32> to vector<1x8x8xf32>
    %83 = vector.shape_cast %75 : vector<8x8xf32> to vector<1x8x8xf32>
    %84 = vector.shape_cast %76 : vector<8x8xf32> to vector<1x8x8xf32>
    %85 = vector.shape_cast %77 : vector<8x8xf32> to vector<1x8x8xf32>
    %86 = vector.shape_cast %78 : vector<8x8xf32> to vector<1x8x8xf32>
    %87 = vector.shape_cast %79 : vector<8x8xf32> to vector<1x8x8xf32>
    %88 = vector.shape_cast %80 : vector<8x8xf32> to vector<1x8x8xf32>
    %89 = tpu.concatenate %81, %82, %83, %84, %85, %86, %87, %88 in 0 : vector<1x8x8xf32>, vector<1x8x8xf32>, vector<1x8x8xf32>, vector<1x8x8xf32>, vector<1x8x8xf32>, vector<1x8x8xf32>, vector<1x8x8xf32>, vector<1x8x8xf32> -> vector<8x8x8xf32>
    %90 = vector.extract_strided_slice %42 {offsets = [0, 0], sizes = [8, 8], strides = [1, 1]} : vector<16x32xf32> to vector<8x8xf32>
    %91 = vector.extract_strided_slice %42 {offsets = [0, 8], sizes = [8, 8], strides = [1, 1]} : vector<16x32xf32> to vector<8x8xf32>
    %92 = vector.extract_strided_slice %42 {offsets = [0, 16], sizes = [8, 8], strides = [1, 1]} : vector<16x32xf32> to vector<8x8xf32>
    %93 = vector.extract_strided_slice %42 {offsets = [0, 24], sizes = [8, 8], strides = [1, 1]} : vector<16x32xf32> to vector<8x8xf32>
    %94 = vector.extract_strided_slice %42 {offsets = [8, 0], sizes = [8, 8], strides = [1, 1]} : vector<16x32xf32> to vector<8x8xf32>
    %95 = vector.extract_strided_slice %42 {offsets = [8, 8], sizes = [8, 8], strides = [1, 1]} : vector<16x32xf32> to vector<8x8xf32>
    %96 = vector.extract_strided_slice %42 {offsets = [8, 16], sizes = [8, 8], strides = [1, 1]} : vector<16x32xf32> to vector<8x8xf32>
    %97 = vector.extract_strided_slice %42 {offsets = [8, 24], sizes = [8, 8], strides = [1, 1]} : vector<16x32xf32> to vector<8x8xf32>
    %98 = vector.shape_cast %90 : vector<8x8xf32> to vector<1x8x8xf32>
    %99 = vector.shape_cast %91 : vector<8x8xf32> to vector<1x8x8xf32>
    %100 = vector.shape_cast %92 : vector<8x8xf32> to vector<1x8x8xf32>
    %101 = vector.shape_cast %93 : vector<8x8xf32> to vector<1x8x8xf32>
    %102 = vector.shape_cast %94 : vector<8x8xf32> to vector<1x8x8xf32>
    %103 = vector.shape_cast %95 : vector<8x8xf32> to vector<1x8x8xf32>
    %104 = vector.shape_cast %96 : vector<8x8xf32> to vector<1x8x8xf32>
    %105 = vector.shape_cast %97 : vector<8x8xf32> to vector<1x8x8xf32>
    %106 = tpu.concatenate %98, %99, %100, %101, %102, %103, %104, %105 in 0 : vector<1x8x8xf32>, vector<1x8x8xf32>, vector<1x8x8xf32>, vector<1x8x8xf32>, vector<1x8x8xf32>, vector<1x8x8xf32>, vector<1x8x8xf32>, vector<1x8x8xf32> -> vector<8x8x8xf32>
    "tpu.trace_start"() <{level = 10 : i32, message = "nqd,nkd->nqk"}> : () -> ()
    %cst_27 = arith.constant dense<0.000000e+00> : vector<8x8x8xf32>
    %107 = tpu.matmul %72, %89, %cst_27 {dimension_numbers = #tpu.dot_dimension_numbers<[2], [2], [1], [1], [0, 0, 0, 1, 1, 1], [0], [0]>} : vector<8x8x8xf32>, vector<8x8x8xf32>, vector<8x8x8xf32> -> vector<8x8x8xf32>
    "tpu.trace_stop"() : () -> ()
    %cst_28 = arith.constant 0.353553385 : f32
    %108 = vector.broadcast %cst_28 : f32 to vector<8x8x8xf32>
    %109 = arith.mulf %107, %108 : vector<8x8x8xf32>
    %110 = vector.broadcast %55 : vector<8x1x8xf32> to vector<8x8x8xf32>
    %111 = arith.addf %109, %110 : vector<8x8x8xf32>
    %cst_29 = arith.constant dense<0xFF800000> : vector<8x8xf32>
    %112 = vector.multi_reduction <maximumf>, %111, %cst_29 [2] : vector<8x8x8xf32> to vector<8x8xf32>
    %113 = vector.shape_cast %112 : vector<8x8xf32> to vector<8x8x1xf32>
    %114 = vector.broadcast %113 : vector<8x8x1xf32> to vector<8x8x8xf32>
    %115 = arith.subf %111, %114 : vector<8x8x8xf32>
    %116 = math.exp %115 : vector<8x8x8xf32>
    %cst_30 = arith.constant dense<0.000000e+00> : vector<8x8xf32>
    %117 = vector.multi_reduction <add>, %116, %cst_30 [2] : vector<8x8x8xf32> to vector<8x8xf32>
    %118 = vector.shape_cast %117 : vector<8x8xf32> to vector<8x8x1xf32>
    %119 = tpu.reciprocal %118 {approx = true} : vector<8x8x1xf32> -> vector<8x8x1xf32>
    %120 = vector.broadcast %119 : vector<8x8x1xf32> to vector<8x8x8xf32>
    %121 = arith.mulf %116, %120 : vector<8x8x8xf32>
    "tpu.trace_start"() <{level = 10 : i32, message = "nqk,nkd->nqd"}> : () -> ()
    %cst_31 = arith.constant dense<0.000000e+00> : vector<8x8x8xf32>
    %122 = tpu.matmul %121, %106, %cst_31 {dimension_numbers = #tpu.dot_dimension_numbers<[2], [1], [1], [2], [0, 0, 0, 1, 1, 2], [0], [0]>} : vector<8x8x8xf32>, vector<8x8x8xf32>, vector<8x8x8xf32> -> vector<8x8x8xf32>
    "tpu.trace_stop"() : () -> ()
    %123 = vector.extract_strided_slice %122 {offsets = [0, 0, 0], sizes = [1, 8, 8], strides = [1, 1, 1]} : vector<8x8x8xf32> to vector<1x8x8xf32>
    %124 = vector.shape_cast %123 : vector<1x8x8xf32> to vector<8x8xf32>
    %125 = vector.extract_strided_slice %122 {offsets = [1, 0, 0], sizes = [1, 8, 8], strides = [1, 1, 1]} : vector<8x8x8xf32> to vector<1x8x8xf32>
    %126 = vector.shape_cast %125 : vector<1x8x8xf32> to vector<8x8xf32>
    %127 = vector.extract_strided_slice %122 {offsets = [2, 0, 0], sizes = [1, 8, 8], strides = [1, 1, 1]} : vector<8x8x8xf32> to vector<1x8x8xf32>
    %128 = vector.shape_cast %127 : vector<1x8x8xf32> to vector<8x8xf32>
    %129 = vector.extract_strided_slice %122 {offsets = [3, 0, 0], sizes = [1, 8, 8], strides = [1, 1, 1]} : vector<8x8x8xf32> to vector<1x8x8xf32>
    %130 = vector.shape_cast %129 : vector<1x8x8xf32> to vector<8x8xf32>
    %131 = tpu.concatenate %124, %126, %128, %130 in 1 : vector<8x8xf32>, vector<8x8xf32>, vector<8x8xf32>, vector<8x8xf32> -> vector<8x32xf32>
    %132 = vector.extract_strided_slice %122 {offsets = [4, 0, 0], sizes = [1, 8, 8], strides = [1, 1, 1]} : vector<8x8x8xf32> to vector<1x8x8xf32>
    %133 = vector.shape_cast %132 : vector<1x8x8xf32> to vector<8x8xf32>
    %134 = vector.extract_strided_slice %122 {offsets = [5, 0, 0], sizes = [1, 8, 8], strides = [1, 1, 1]} : vector<8x8x8xf32> to vector<1x8x8xf32>
    %135 = vector.shape_cast %134 : vector<1x8x8xf32> to vector<8x8xf32>
    %136 = vector.extract_strided_slice %122 {offsets = [6, 0, 0], sizes = [1, 8, 8], strides = [1, 1, 1]} : vector<8x8x8xf32> to vector<1x8x8xf32>
    %137 = vector.shape_cast %136 : vector<1x8x8xf32> to vector<8x8xf32>
    %138 = vector.extract_strided_slice %122 {offsets = [7, 0, 0], sizes = [1, 8, 8], strides = [1, 1, 1]} : vector<8x8x8xf32> to vector<1x8x8xf32>
    %139 = vector.shape_cast %138 : vector<1x8x8xf32> to vector<8x8xf32>
    %140 = tpu.concatenate %133, %135, %137, %139 in 1 : vector<8x8xf32>, vector<8x8xf32>, vector<8x8xf32>, vector<8x8xf32> -> vector<8x32xf32>
    %141 = tpu.concatenate %131, %140 in 0 : vector<8x32xf32>, vector<8x32xf32> -> vector<16x32xf32>
    %cst_32 = arith.constant dense<0.000000e+00> : vector<16x32xf32>
    %142 = tpu.matmul %141, %1, %cst_32 {dimension_numbers = #tpu.dot_dimension_numbers<[1], [0], [0], [1], [0, 0, 1, 1], [], []>} : vector<16x32xf32>, vector<32x32xf32>, vector<16x32xf32> -> vector<16x32xf32>
    %143 = vector.broadcast %7 : vector<1x32xf32> to vector<16x32xf32>
    %144 = arith.addf %142, %143 : vector<16x32xf32>
    %145 = arith.addf %13, %144 : vector<16x32xf32>
    %cst_33 = arith.constant dense<0.000000e+00> : vector<16xf32>
    %146 = vector.multi_reduction <add>, %145, %cst_33 [1] : vector<16x32xf32> to vector<16xf32>
    %147 = vector.shape_cast %146 : vector<16xf32> to vector<16x1xf32>
    %cst_34 = arith.constant 3.200000e+01 : f32
    %148 = vector.broadcast %cst_34 : f32 to vector<16x1xf32>
    %149 = arith.divf %147, %148 : vector<16x1xf32>
    %150 = vector.broadcast %149 : vector<16x1xf32> to vector<16x32xf32>
    %151 = arith.subf %145, %150 : vector<16x32xf32>
    %152 = arith.mulf %151, %151 : vector<16x32xf32>
    %cst_35 = arith.constant dense<0.000000e+00> : vector<16xf32>
    %153 = vector.multi_reduction <add>, %152, %cst_35 [1] : vector<16x32xf32> to vector<16xf32>
    %154 = vector.shape_cast %153 : vector<16xf32> to vector<16x1xf32>
    %cst_36 = arith.constant 0.0322580636 : f32
    %155 = vector.broadcast %cst_36 : f32 to vector<16x1xf32>
    %156 = arith.mulf %154, %155 : vector<16x1xf32>
    %157 = math.sqrt %156 : vector<16x1xf32>
    %cst_37 = arith.constant 9.99999997E-7 : f32
    %158 = vector.broadcast %cst_37 : f32 to vector<16x1xf32>
    %159 = arith.addf %157, %158 : vector<16x1xf32>
    %160 = tpu.reciprocal %159 {approx = true} : vector<16x1xf32> -> vector<16x1xf32>
    %161 = vector.broadcast %149 : vector<16x1xf32> to vector<16x32xf32>
    %162 = arith.subf %145, %161 : vector<16x32xf32>
    %163 = vector.broadcast %8 : vector<1x32xf32> to vector<16x32xf32>
    %164 = arith.mulf %163, %162 : vector<16x32xf32>
    %165 = vector.broadcast %160 : vector<16x1xf32> to vector<16x32xf32>
    %166 = arith.mulf %164, %165 : vector<16x32xf32>
    %167 = vector.broadcast %9 : vector<1x32xf32> to vector<16x32xf32>
    %168 = arith.addf %166, %167 : vector<16x32xf32>
    %cst_38 = arith.constant dense<0.000000e+00> : vector<16x64xf32>
    %169 = tpu.matmul %168, %2, %cst_38 {dimension_numbers = #tpu.dot_dimension_numbers<[1], [0], [0], [1], [0, 0, 1, 1], [], []>} : vector<16x32xf32>, vector<32x64xf32>, vector<16x64xf32> -> vector<16x64xf32>
    %170 = vector.broadcast %10 : vector<1x64xf32> to vector<16x64xf32>
    %171 = arith.addf %169, %170 : vector<16x64xf32>
    %cst_39 = arith.constant 0.000000e+00 : f32
    %172 = vector.broadcast %cst_39 : f32 to vector<16x64xf32>
    %173 = arith.maximumf %171, %172 : vector<16x64xf32>
    %cst_40 = arith.constant dense<0.000000e+00> : vector<16x32xf32>
    %174 = tpu.matmul %173, %3, %cst_40 {dimension_numbers = #tpu.dot_dimension_numbers<[1], [0], [0], [1], [0, 0, 1, 1], [], []>} : vector<16x64xf32>, vector<64x32xf32>, vector<16x32xf32> -> vector<16x32xf32>
    %175 = vector.broadcast %11 : vector<1x32xf32> to vector<16x32xf32>
    %176 = arith.addf %174, %175 : vector<16x32xf32>
    %177 = arith.addf %145, %176 : vector<16x32xf32>
    %178 = vector.shape_cast %177 : vector<16x32xf32> to vector<2x8x32xf32>
    %c0_41 = arith.constant 0 : index
    %c0_42 = arith.constant 0 : index
    %c0_43 = arith.constant 0 : index
    %179 = vector.load %arg5[%c0_41, %c0_42, %c0_43] : memref<2x8x32xf32, #tpu.memory_space<vmem>>, vector<2x8x32xf32>
    tpu.vector_store %arg5[%c0_41, %c0_42, %c0_43], %178 {strides = array<i32>} : memref<2x8x32xf32, #tpu.memory_space<vmem>>, vector<2x8x32xf32>,
    return
  }
  func.func @transform_0(%arg0: i32) -> (i32, i32, i32) {
    %c0_i32 = arith.constant 0 : i32
    %c0_i32_0 = arith.constant 0 : i32
    %c0_i32_1 = arith.constant 0 : i32
    %c0_i32_2 = arith.constant 0 : i32
    return %c0_i32, %c0_i32_0, %c0_i32_1 : i32, i32, i32
  }
  func.func @transform_1(%arg0: i32) -> (i32, i32, i32) {
    %c0_i32 = arith.constant 0 : i32
    %c0_i32_0 = arith.constant 0 : i32
    %c0_i32_1 = arith.constant 0 : i32
    %c0_i32_2 = arith.constant 0 : i32
    return %c0_i32, %c0_i32_0, %c0_i32_1 : i32, i32, i32
  }
  func.func @transform_2(%arg0: i32) -> (i32, i32) {
    %c0_i32 = arith.constant 0 : i32
    %c0_i32_0 = arith.constant 0 : i32
    %c0_i32_1 = arith.constant 0 : i32
    return %c0_i32, %c0_i32_0 : i32, i32
  }
  func.func @transform_3(%arg0: i32) -> (i32, i32) {
    %c0_i32 = arith.constant 0 : i32
    %c0_i32_0 = arith.constant 0 : i32
    %c0_i32_1 = arith.constant 0 : i32
    return %c0_i32, %c0_i32_0 : i32, i32
  }
  func.func @transform_4(%arg0: i32) -> (i32, i32, i32) {
    %c0_i32 = arith.constant 0 : i32
    %c0_i32_0 = arith.constant 0 : i32
    %c0_i32_1 = arith.constant 0 : i32
    %c0_i32_2 = arith.constant 0 : i32
    return %c0_i32, %c0_i32_0, %c0_i32_1 : i32, i32, i32
  }
}

</mosaic_0001>

<llo_original>
// kernel: tpu_custom_call.1
$region0: #{tpu_custom_call.1}
  #allocation0 [shape = 'u32[]', space=smem, size = 0x4, offset = 0x4, fixed_abs, tag = 'smem constant byte address 0x4 - core index']
  #allocation1 [shape = 'u32[144,128]{1,0:T(1,128)}', space=vmem, size = 0x12000, scoped, tag = 'internal scratch']
  %s0 = inlined_call_operand.hbm [shape: f32[2,8,32], index: 0, kind: input, shape index: {}]
  %s1 = inlined_call_operand.vmem [shape: f32[2,1,8], index: 1, kind: input, shape index: {}]
  %s2 = inlined_call_operand.hbm [shape: f32[160,128], index: 2, kind: input, shape index: {}]
  %s3 = inlined_call_operand.vmem [shape: f32[8,128], index: 3, kind: input, shape index: {}]
  %s4 = inlined_call_operand.hbm [shape: f32[2,8,32], index: 4, kind: output, shape index: {}]
  %s5 = sld [smem:[#allocation0]]
  $region34: #{tpu_custom_call.1} parent=0
    _
  %s7 = ssub.s32 1, %s5
  %s8 = scalar_select 0, %s7, %s5
  $region1: #{tpu_custom_call.1} parent=0
    #allocation2 [shape = 'u8[8192]{0}', space=vmem, size = 0x2000, scoped, tag = 'input window, operand 0, single buffered']
    #allocation3 [shape = 's32[1]{0}', space=sflag, size = 0x4, scoped, tag = 'scoped memory for tpu_custom_call.1']
    #allocation4 [shape = 's32[1]{0}', space=sflag, size = 0x4, scoped, tag = 'scoped memory for tpu_custom_call.1']
    #allocation5 [shape = 'u8[81920]{0}', space=vmem, size = 0x14000, scoped, tag = 'input window, operand 2, single buffered']
    #allocation6 [shape = 's32[1]{0}', space=sflag, size = 0x4, scoped, tag = 'scoped memory for tpu_custom_call.1']
    #allocation7 [shape = 'u8[8192]{0}', space=vmem, size = 0x2000, scoped, tag = 'output window, operand 0, single buffered']
    %9 = vsyncpa [#allocation3], 0
    %10 = vsyncpa [#allocation6], 0
    %11 = vsyncpa [#allocation4], 0
    // Predicated region
    $region2: #{tpu_custom_call.1} parent=1 // pred_check
      _
    $region3: #{tpu_custom_call.1} parent=1 // pred_check_branch
      %13 = sbr.rel (0) target = $region5
    $region4: #{tpu_custom_call.1} parent=1 // pred_region
      %s15 = ssub.s32 256, 256
      %16 = vsyncadd [#allocation3], %s15
      %s17 = sshll.u32 [#allocation2], 4
      %s18 = int_to_ptr.vmem [resolvable:$true] %s17
      %23 = dma.hbm_to_vmem [thread:$0]  %s0, 256, %s18, [#allocation3], 128, 128, 8
    $region5: #{tpu_custom_call.1} parent=1 // pred_fallthru
      _
    // Predicated region
    $region6: #{tpu_custom_call.1} parent=1 // pred_check
      _
    $region7: #{tpu_custom_call.1} parent=1 // pred_check_branch
      %25 = sbr.rel (0) target = $region9
    $region8: #{tpu_custom_call.1} parent=1 // pred_region
      _
    $region9: #{tpu_custom_call.1} parent=1 // pred_fallthru
      _
    // Predicated region
    $region10: #{tpu_custom_call.1} parent=1 // pred_check
      _
    $region11: #{tpu_custom_call.1} parent=1 // pred_check_branch
      %27 = sbr.rel (0) target = $region13
    $region12: #{tpu_custom_call.1} parent=1 // pred_region
      %s29 = ssub.s32 2560, 2560
      %30 = vsyncadd [#allocation6], %s29
      %s31 = sshll.u32 [#allocation5], 4
      %s32 = int_to_ptr.vmem [resolvable:$true] %s31
      %37 = dma.hbm_to_vmem [thread:$0]  %s2, 2560, %s32, [#allocation6], 128, 128, 8
    $region13: #{tpu_custom_call.1} parent=1 // pred_fallthru
      _
    // Predicated region
    $region14: #{tpu_custom_call.1} parent=1 // pred_check
      _
    $region15: #{tpu_custom_call.1} parent=1 // pred_check_branch
      %39 = sbr.rel (0) target = $region17
    $region16: #{tpu_custom_call.1} parent=1 // pred_region
      _
    $region17: #{tpu_custom_call.1} parent=1 // pred_fallthru
      _
    // Predicated region
    $region18: #{tpu_custom_call.1} parent=1 // pred_check
      _
    $region19: #{tpu_custom_call.1} parent=1 // pred_check_branch
      %41 = sbr.rel (0) target = $region21
    $region20: #{tpu_custom_call.1} parent=1 // pred_region
      %42 = dma.done [#allocation3], 256
    $region21: #{tpu_custom_call.1} parent=1 // pred_fallthru
      _
    // Predicated region
    $region22: #{tpu_custom_call.1} parent=1 // pred_check
      _
    $region23: #{tpu_custom_call.1} parent=1 // pred_check_branch
      %44 = sbr.rel (0) target = $region25
    $region24: #{tpu_custom_call.1} parent=1 // pred_region
      %45 = dma.done [#allocation6], 2560
    $region25: #{tpu_custom_call.1} parent=1 // pred_fallthru
      _
    %v46 = vld [vmem:[#allocation5] sm:$0xff]
    %v47 = vld [vmem:[#allocation5 + $0x8] sm:$0xff]
    %v48 = vld [vmem:[#allocation5 + $0x10] sm:$0xff]
    %v49 = vld [vmem:[#allocation5 + $0x18] sm:$0xff]
    %v50 = vld [vmem:[#allocation5 + $0x20] sm:$0xff]
    %v51 = vld [vmem:[#allocation5 + $0x28] sm:$0xff]
    %v52 = vld [vmem:[#allocation5 + $0x30] sm:$0xff]
    %v53 = vld [vmem:[#allocation5 + $0x38] sm:$0xff]
    %v54 = vld [vmem:[#allocation5 + $0x40] sm:$0xff]
    %v55 = vld [vmem:[#allocation5 + $0x48] sm:$0xff]
    %v56 = vld [vmem:[#allocation5 + $0x50] sm:$0xff]
    %v57 = vld [vmem:[#allocation5 + $0x58] sm:$0xff]
    %v58 = vld [vmem:[#allocation5 + $0x60] sm:$0xff]
    %v59 = vld [vmem:[#allocation5 + $0x68] sm:$0xff]
    %v60 = vld [vmem:[#allocation5 + $0x70] sm:$0xff]
    %v61 = vld [vmem:[#allocation5 + $0x78] sm:$0xff]
    %v62 = vld [vmem:[#allocation5 + $0x80] sm:$0xff]
    %v63 = vld [vmem:[#allocation5 + $0x88] sm:$0xff]
    %v64 = vld [vmem:[#allocation5 + $0x90] sm:$0xff]
    %v65 = vld [vmem:[#allocation5 + $0x98] sm:$0xff]
    %v66 = vld [vmem:[%s3] sm:$0x1]
    %v67 = vld [vmem:[%s3 + $0x1] sm:$0x1]
    %v68 = vld [vmem:[%s3 + $0x2] sm:$0x1]
    %v69 = vld [vmem:[%s3 + $0x3] sm:$0x1]
    %v70 = vld [vmem:[%s3 + $0x4] sm:$0x1]
    %v71 = vld [vmem:[%s3 + $0x5] sm:$0x1]
    %v72 = vld [vmem:[%s3 + $0x6] sm:$0x1]
    %v73 = vld [vmem:[%s3 + $0x7] sm:$0x1]
    %v74 = vld [vmem:[#allocation2] sm:$0xff]
    %v75 = vld [vmem:[#allocation2 + $0x8] sm:$0xff]
    %vm76 = vcmask 261120
    %v77 = vsel %vm76, %v74, 0.0
    %78 = vadd.xlane.f32.xlu0 %v77
    %v79 = vpop.xlane.xlu0 %78
    %v80 = vsel %vm76, %v75, 0.0
    %81 = vadd.xlane.f32.xlu0 %v80
    %v82 = vpop.xlane.xlu0 %81
    %v83 = vrcp.pop 32.0
    %v84 = vmul.f32 %v79, %v83
    %v85 = vmul.f32 %v82, %v83
    %v86 = vsub.f32 %v74, %v84
    %v87 = vsub.f32 %v75, %v85
    %v88 = vmul.f32 %v86, %v86
    %v89 = vmul.f32 %v87, %v87
    %v90 = vsel %vm76, %v88, 0.0
    %91 = vadd.xlane.f32.xlu0 %v90
    %v92 = vpop.xlane.xlu0 %91
    %v93 = vsel %vm76, %v89, 0.0
    %94 = vadd.xlane.f32.xlu0 %v93
    %v95 = vpop.xlane.xlu0 %94
    %v96 = vmul.f32 %v92, 0.032258064
    %v97 = vmul.f32 %v95, 0.032258064
    %v98 = vrsqrt.pop %v96
    %v99 = vmul.f32 %v96, %v98
    %vm100 = vcmp.eq.f32.partialorder %v96, inf
    %v101 = vsel %vm100, %v96, %v99
    %vm102 = vcmp.eq.f32.partialorder %v96, 0.0
    %v103 = vand.u32 %v96, 2147483648
    %v104 = vsel %vm102, %v103, %v101
    %v105 = vrsqrt.pop %v97
    %v106 = vmul.f32 %v97, %v105
    %vm107 = vcmp.eq.f32.partialorder %v97, inf
    %v108 = vsel %vm107, %v97, %v106
    %vm109 = vcmp.eq.f32.partialorder %v97, 0.0
    %v110 = vand.u32 %v97, 2147483648
    %v111 = vsel %vm109, %v110, %v108
    %v112 = vadd.f32 %v104, 1e-06
    %v113 = vadd.f32 %v111, 1e-06
    %v114 = vrcp.pop %v112
    %v115 = vrcp.pop %v113
    %v116 = vlaneseq
    %v117 = vshrl.u32 %v116, 7
    %v118 = vsub.s32 0, %v117
    %v119 = vrot.slane %v66, %v118
    %v120 = vmul.f32 %v119, %v86
    %v121 = vmul.f32 %v119, %v87
    %v122 = vmul.f32 %v120, %v114
    %v123 = vmul.f32 %v121, %v115
    %v124 = vlaneseq
    %v125 = vshrl.u32 %v124, 7
    %v126 = vsub.s32 0, %v125
    %v127 = vrot.slane %v67, %v126
    %v128 = vadd.f32 %v122, %v127
    %v129 = vadd.f32 %v123, %v127
    %v130 = vlaneseq
    %v131 = vshrl.u32 %v130, 7
    %v132 = vsub.s32 0, %v131
    %v133 = vrot.slane %v68, %v132
    %v135 = vsel %vm76, %v128, 0
    %v138 = vsel %vm76, %v129, 0
    %140 = vmatprep.subr.mxu0 0.0
    %141 = vmatpush1.msra.mxu0 %v46
    %142 = vmatprep.subr.mxu0 0.0
    %143 = vmatpush1.msra.mxu0 %v47
    %144 = vmatprep.subr.mxu0 0.0
    %145 = vmatpush1.msra.mxu0 %v48
    %146 = vmatprep.subr.mxu0 0.0
    %147 = vmatpush1.msra.mxu0 %v49
    %148 = vmatprep.subr.mxu0 0.0
    %149 = vmatpush1.msra.mxu0 0.0
    %150 = vmatprep.subr.mxu0 0.0
    %151 = vmatpush1.msra.mxu0 0.0
    %152 = vmatprep.subr.mxu0 0.0
    %153 = vmatpush1.msra.mxu0 0.0
    %154 = vmatprep.subr.mxu0 0.0
    %155 = vmatpush1.msra.mxu0 0.0
    %156 = vmatprep.subr.mxu0 0.0
    %157 = vmatpush1.msra.mxu0 0.0
    %158 = vmatprep.subr.mxu0 0.0
    %159 = vmatpush1.msra.mxu0 0.0
    %160 = vmatprep.subr.mxu0 0.0
    %161 = vmatpush1.msra.mxu0 0.0
    %162 = vmatprep.subr.mxu0 0.0
    %163 = vmatpush1.msra.mxu0 0.0
    %164 = vmatprep.subr.mxu0 0.0
    %165 = vmatpush1.msra.mxu0 0.0
    %166 = vmatprep.subr.mxu0 0.0
    %167 = vmatpush1.msra.mxu0 0.0
    %168 = vmatprep.subr.mxu0 0.0
    %169 = vmatpush1.msra.mxu0 0.0
    %170 = vmatprep.subr.mxu0 0.0
    %171 = vmatpush1.msra.mxu0 0.0
    %172 = vmatprep.subr.mxu0 0.0
    %173 = vmatpush1.msra.mxu0 0.0
    %174 = vmatprep.subr.mxu0 0.0
    %175 = vmatpush1.msra.mxu0 0.0
    %176 = vmatprep.subr.mxu0 0.0
    %177 = vmatpush1.msra.mxu0 0.0
    %178 = vmatprep.subr.mxu0 0.0
    %179 = vmatpush1.msra.mxu0 0.0
    %180 = vmatprep.subr.mxu0 0.0
    %181 = vmatpush1.msra.mxu0 0.0
    %182 = vmatprep.subr.mxu0 0.0
    %183 = vmatpush1.msra.mxu0 0.0
    %184 = vmatprep.subr.mxu0 0.0
    %185 = vmatpush1.msra.mxu0 0.0
    %186 = vmatprep.subr.mxu0 0.0
    %187 = vmatpush1.msra.mxu0 0.0
    %188 = vmatprep.subr.mxu0 0.0
    %189 = vmatpush1.msra.mxu0 0.0
    %190 = vmatprep.subr.mxu0 0.0
    %191 = vmatpush1.msra.mxu0 0.0
    %192 = vmatprep.subr.mxu0 0.0
    %193 = vmatpush1.msra.mxu0 0.0
    %194 = vmatprep.subr.mxu0 0.0
    %195 = vmatpush1.msra.mxu0 0.0
    %196 = vmatprep.subr.mxu0 0.0
    %197 = vmatpush1.msra.mxu0 0.0
    %198 = vmatprep.subr.mxu0 0.0
    %199 = vmatpush1.msra.mxu0 0.0
    %200 = vmatprep.subr.mxu0 0.0
    %201 = vmatpush1.msra.mxu0 0.0
    %202 = vmatprep.subr.mxu0 0.0
    %203 = vmatpush1.msra.mxu0 0.0
    %204 = vmatprep.mubr.f32.mxu0 0.0
    %205 = vmatmul.mubr.f32.gmra.mrb[0].mxu0 %v135
    %v206 = vpop.f32.mrb[0].mxu0
    %v207 = vadd.f32 %v133, %v206
    %v208 = vpop.f32.mrb[0].mxu0
    %209 = vmatprep.mubr.f32.mxu0 0.0
    %210 = vmatmul.mubr.f32.gmra.mrb[0].mxu0 %v138
    %v211 = vpop.f32.mrb[0].mxu0
    %v212 = vadd.f32 %v133, %v211
    %v213 = vpop.f32.mrb[0].mxu0
    %214 = vdwg.mxu0
    %v215 = vld [vmem:[%s1] sm:$0x1]
    %v216 = vld [vmem:[%s1 + $0x1] sm:$0x1]
    %vm217 = vcmp.gt.f32.partialorder %v215, 0.0
    %vm218 = vcmp.gt.f32.partialorder %v216, 0.0
    %v219 = vsel %vm217, 0.0, -1e+09
    %v220 = vsel %vm218, 0.0, -1e+09
    %222 = vrot.lane.b32.xlu0 %v207, 120
    %v223 = vpop.permute.xlu0 %222
    %224 = vrot.lane.b32.xlu0 %v207, 112
    %v225 = vpop.permute.xlu0 %224
    %226 = vrot.lane.b32.xlu0 %v207, 104
    %v227 = vpop.permute.xlu0 %226
    %229 = vrot.lane.b32.xlu0 %v212, 120
    %v230 = vpop.permute.xlu0 %229
    %231 = vrot.lane.b32.xlu0 %v212, 112
    %v232 = vpop.permute.xlu0 %231
    %233 = vrot.lane.b32.xlu0 %v212, 104
    %v234 = vpop.permute.xlu0 %233
    %235 = vrot.lane.b32.xlu0 %v207, 96
    %v236 = vpop.permute.xlu0 %235
    %vm237 = vcmask 64512
    %v238 = vsel %vm237, %v207, 0
    %v240 = vsel %vm237, %v236, 0
    %242 = vmatprep.subr.mxu0 0.0
    %243 = vmatpush1.xpose.msra.mxu0 %v240
    %244 = vmatprep.subr.mxu0 0.0
    %245 = vmatpush1.xpose.msra.mxu0 0.0
    %246 = vmatprep.subr.mxu0 0.0
    %247 = vmatpush1.xpose.msra.mxu0 0.0
    %248 = vmatprep.subr.mxu0 0.0
    %249 = vmatpush1.xpose.msra.mxu0 0.0
    %250 = vmatprep.subr.mxu0 0.0
    %251 = vmatpush1.xpose.msra.mxu0 0.0
    %252 = vmatprep.subr.mxu0 0.0
    %253 = vmatpush1.xpose.msra.mxu0 0.0
    %254 = vmatprep.subr.mxu0 0.0
    %255 = vmatpush1.xpose.msra.mxu0 0.0
    %256 = vmatprep.subr.mxu0 0.0
    %257 = vmatpush1.xpose.msra.mxu0 0.0
    %258 = vmatprep.subr.mxu0 0.0
    %259 = vmatpush1.xpose.msra.mxu0 0.0
    %260 = vmatprep.subr.mxu0 0.0
    %261 = vmatpush1.xpose.msra.mxu0 0.0
    %262 = vmatprep.subr.mxu0 0.0
    %263 = vmatpush1.xpose.msra.mxu0 0.0
    %264 = vmatprep.subr.mxu0 0.0
    %265 = vmatpush1.xpose.msra.mxu0 0.0
    %266 = vmatprep.subr.mxu0 0.0
    %267 = vmatpush1.xpose.msra.mxu0 0.0
    %268 = vmatprep.subr.mxu0 0.0
    %269 = vmatpush1.xpose.msra.mxu0 0.0
    %270 = vmatprep.subr.mxu0 0.0
    %271 = vmatpush1.xpose.msra.mxu0 0.0
    %272 = vmatprep.subr.mxu0 0.0
    %273 = vmatpush1.xpose.msra.mxu0 0.0
    %274 = vmatprep.subr.mxu0 0.0
    %275 = vmatpush1.xpose.msra.mxu0 0.0
    %276 = vmatprep.subr.mxu0 0.0
    %277 = vmatpush1.xpose.msra.mxu0 0.0
    %278 = vmatprep.subr.mxu0 0.0
    %279 = vmatpush1.xpose.msra.mxu0 0.0
    %280 = vmatprep.subr.mxu0 0.0
    %281 = vmatpush1.xpose.msra.mxu0 0.0
    %282 = vmatprep.subr.mxu0 0.0
    %283 = vmatpush1.xpose.msra.mxu0 0.0
    %284 = vmatprep.subr.mxu0 0.0
    %285 = vmatpush1.xpose.msra.mxu0 0.0
    %286 = vmatprep.subr.mxu0 0.0
    %287 = vmatpush1.xpose.msra.mxu0 0.0
    %288 = vmatprep.subr.mxu0 0.0
    %289 = vmatpush1.xpose.msra.mxu0 0.0
    %290 = vmatprep.subr.mxu0 0.0
    %291 = vmatpush1.xpose.msra.mxu0 0.0
    %292 = vmatprep.subr.mxu0 0.0
    %293 = vmatpush1.xpose.msra.mxu0 0.0
    %294 = vmatprep.subr.mxu0 0.0
    %295 = vmatpush1.xpose.msra.mxu0 0.0
    %296 = vmatprep.subr.mxu0 0.0
    %297 = vmatpush1.xpose.msra.mxu0 0.0
    %298 = vmatprep.subr.mxu0 0.0
    %299 = vmatpush1.xpose.msra.mxu0 0.0
    %300 = vmatprep.subr.mxu0 0.0
    %301 = vmatpush1.xpose.msra.mxu0 0.0
    %302 = vmatprep.subr.mxu0 0.0
    %303 = vmatpush1.xpose.msra.mxu0 0.0
    %304 = vmatprep.subr.mxu0 0.0
    %305 = vmatpush1.xpose.msra.mxu0 0.0
    %306 = vmatprep.mubr.f32.mxu0 0.0
    %307 = vmatmul.mubr.f32.gmra.mrb[0].mxu0 %v238
    %v308 = vpop.f32.mrb[0].mxu0
    %v309 = vadd.f32 0.0, %v308
    %v310 = vpop.f32.mrb[0].mxu0
    %311 = vdwg.mxu0
    %312 = vrot.lane.b32.xlu0 %v223, 96
    %v313 = vpop.permute.xlu0 %312
    %v314 = vsel %vm237, %v223, 0
    %v316 = vsel %vm237, %v313, 0
    %318 = vmatprep.subr.mxu0 0.0
    %319 = vmatpush1.xpose.msra.mxu0 %v316
    %320 = vmatprep.subr.mxu0 0.0
    %321 = vmatpush1.xpose.msra.mxu0 0.0
    %322 = vmatprep.subr.mxu0 0.0
    %323 = vmatpush1.xpose.msra.mxu0 0.0
    %324 = vmatprep.subr.mxu0 0.0
    %325 = vmatpush1.xpose.msra.mxu0 0.0
    %326 = vmatprep.subr.mxu0 0.0
    %327 = vmatpush1.xpose.msra.mxu0 0.0
    %328 = vmatprep.subr.mxu0 0.0
    %329 = vmatpush1.xpose.msra.mxu0 0.0
    %330 = vmatprep.subr.mxu0 0.0
    %331 = vmatpush1.xpose.msra.mxu0 0.0
    %332 = vmatprep.subr.mxu0 0.0
    %333 = vmatpush1.xpose.msra.mxu0 0.0
    %334 = vmatprep.subr.mxu0 0.0
    %335 = vmatpush1.xpose.msra.mxu0 0.0
    %336 = vmatprep.subr.mxu0 0.0
    %337 = vmatpush1.xpose.msra.mxu0 0.0
    %338 = vmatprep.subr.mxu0 0.0
    %339 = vmatpush1.xpose.msra.mxu0 0.0
    %340 = vmatprep.subr.mxu0 0.0
    %341 = vmatpush1.xpose.msra.mxu0 0.0
    %342 = vmatprep.subr.mxu0 0.0
    %343 = vmatpush1.xpose.msra.mxu0 0.0
    %344 = vmatprep.subr.mxu0 0.0
    %345 = vmatpush1.xpose.msra.mxu0 0.0
    %346 = vmatprep.subr.mxu0 0.0
    %347 = vmatpush1.xpose.msra.mxu0 0.0
    %348 = vmatprep.subr.mxu0 0.0
    %349 = vmatpush1.xpose.msra.mxu0 0.0
    %350 = vmatprep.subr.mxu0 0.0
    %351 = vmatpush1.xpose.msra.mxu0 0.0
    %352 = vmatprep.subr.mxu0 0.0
    %353 = vmatpush1.xpose.msra.mxu0 0.0
    %354 = vmatprep.subr.mxu0 0.0
    %355 = vmatpush1.xpose.msra.mxu0 0.0
    %356 = vmatprep.subr.mxu0 0.0
    %357 = vmatpush1.xpose.msra.mxu0 0.0
    %358 = vmatprep.subr.mxu0 0.0
    %359 = vmatpush1.xpose.msra.mxu0 0.0
    %360 = vmatprep.subr.mxu0 0.0
    %361 = vmatpush1.xpose.msra.mxu0 0.0
    %362 = vmatprep.subr.mxu0 0.0
    %363 = vmatpush1.xpose.msra.mxu0 0.0
    %364 = vmatprep.subr.mxu0 0.0
    %365 = vmatpush1.xpose.msra.mxu0 0.0
    %366 = vmatprep.subr.mxu0 0.0
    %367 = vmatpush1.xpose.msra.mxu0 0.0
    %368 = vmatprep.subr.mxu0 0.0
    %369 = vmatpush1.xpose.msra.mxu0 0.0
    %370 = vmatprep.subr.mxu0 0.0
    %371 = vmatpush1.xpose.msra.mxu0 0.0
    %372 = vmatprep.subr.mxu0 0.0
    %373 = vmatpush1.xpose.msra.mxu0 0.0
    %374 = vmatprep.subr.mxu0 0.0
    %375 = vmatpush1.xpose.msra.mxu0 0.0
    %376 = vmatprep.subr.mxu0 0.0
    %377 = vmatpush1.xpose.msra.mxu0 0.0
    %378 = vmatprep.subr.mxu0 0.0
    %379 = vmatpush1.xpose.msra.mxu0 0.0
    %380 = vmatprep.subr.mxu0 0.0
    %381 = vmatpush1.xpose.msra.mxu0 0.0
    %382 = vmatprep.mubr.f32.mxu0 0.0
    %383 = vmatmul.mubr.f32.gmra.mrb[0].mxu0 %v314
    %v384 = vpop.f32.mrb[0].mxu0
    %v385 = vadd.f32 0.0, %v384
    %v386 = vpop.f32.mrb[0].mxu0
    %387 = vdwg.mxu0
    %388 = vrot.lane.b32.xlu0 %v225, 96
    %v389 = vpop.permute.xlu0 %388
    %v390 = vsel %vm237, %v225, 0
    %v392 = vsel %vm237, %v389, 0
    %394 = vmatprep.subr.mxu0 0.0
    %395 = vmatpush1.xpose.msra.mxu0 %v392
    %396 = vmatprep.subr.mxu0 0.0
    %397 = vmatpush1.xpose.msra.mxu0 0.0
    %398 = vmatprep.subr.mxu0 0.0
    %399 = vmatpush1.xpose.msra.mxu0 0.0
    %400 = vmatprep.subr.mxu0 0.0
    %401 = vmatpush1.xpose.msra.mxu0 0.0
    %402 = vmatprep.subr.mxu0 0.0
    %403 = vmatpush1.xpose.msra.mxu0 0.0
    %404 = vmatprep.subr.mxu0 0.0
    %405 = vmatpush1.xpose.msra.mxu0 0.0
    %406 = vmatprep.subr.mxu0 0.0
    %407 = vmatpush1.xpose.msra.mxu0 0.0
    %408 = vmatprep.subr.mxu0 0.0
    %409 = vmatpush1.xpose.msra.mxu0 0.0
    %410 = vmatprep.subr.mxu0 0.0
    %411 = vmatpush1.xpose.msra.mxu0 0.0
    %412 = vmatprep.subr.mxu0 0.0
    %413 = vmatpush1.xpose.msra.mxu0 0.0
    %414 = vmatprep.subr.mxu0 0.0
    %415 = vmatpush1.xpose.msra.mxu0 0.0
    %416 = vmatprep.subr.mxu0 0.0
    %417 = vmatpush1.xpose.msra.mxu0 0.0
    %418 = vmatprep.subr.mxu0 0.0
    %419 = vmatpush1.xpose.msra.mxu0 0.0
    %420 = vmatprep.subr.mxu0 0.0
    %421 = vmatpush1.xpose.msra.mxu0 0.0
    %422 = vmatprep.subr.mxu0 0.0
    %423 = vmatpush1.xpose.msra.mxu0 0.0
    %424 = vmatprep.subr.mxu0 0.0
    %425 = vmatpush1.xpose.msra.mxu0 0.0
    %426 = vmatprep.subr.mxu0 0.0
    %427 = vmatpush1.xpose.msra.mxu0 0.0
    %428 = vmatprep.subr.mxu0 0.0
    %429 = vmatpush1.xpose.msra.mxu0 0.0
    %430 = vmatprep.subr.mxu0 0.0
    %431 = vmatpush1.xpose.msra.mxu0 0.0
    %432 = vmatprep.subr.mxu0 0.0
    %433 = vmatpush1.xpose.msra.mxu0 0.0
    %434 = vmatprep.subr.mxu0 0.0
    %435 = vmatpush1.xpose.msra.mxu0 0.0
    %436 = vmatprep.subr.mxu0 0.0
    %437 = vmatpush1.xpose.msra.mxu0 0.0
    %438 = vmatprep.subr.mxu0 0.0
    %439 = vmatpush1.xpose.msra.mxu0 0.0
    %440 = vmatprep.subr.mxu0 0.0
    %441 = vmatpush1.xpose.msra.mxu0 0.0
    %442 = vmatprep.subr.mxu0 0.0
    %443 = vmatpush1.xpose.msra.mxu0 0.0
    %444 = vmatprep.subr.mxu0 0.0
    %445 = vmatpush1.xpose.msra.mxu0 0.0
    %446 = vmatprep.subr.mxu0 0.0
    %447 = vmatpush1.xpose.msra.mxu0 0.0
    %448 = vmatprep.subr.mxu0 0.0
    %449 = vmatpush1.xpose.msra.mxu0 0.0
    %450 = vmatprep.subr.mxu0 0.0
    %451 = vmatpush1.xpose.msra.mxu0 0.0
    %452 = vmatprep.subr.mxu0 0.0
    %453 = vmatpush1.xpose.msra.mxu0 0.0
    %454 = vmatprep.subr.mxu0 0.0
    %455 = vmatpush1.xpose.msra.mxu0 0.0
    %456 = vmatprep.subr.mxu0 0.0
    %457 = vmatpush1.xpose.msra.mxu0 0.0
    %458 = vmatprep.mubr.f32.mxu0 0.0
    %459 = vmatmul.mubr.f32.gmra.mrb[0].mxu0 %v390
    %v460 = vpop.f32.mrb[0].mxu0
    %v461 = vadd.f32 0.0, %v460
    %v462 = vpop.f32.mrb[0].mxu0
    %463 = vdwg.mxu0
    %464 = vrot.lane.b32.xlu0 %v227, 96
    %v465 = vpop.permute.xlu0 %464
    %v466 = vsel %vm237, %v227, 0
    %v468 = vsel %vm237, %v465, 0
    %470 = vmatprep.subr.mxu0 0.0
    %471 = vmatpush1.xpose.msra.mxu0 %v468
    %472 = vmatprep.subr.mxu0 0.0
    %473 = vmatpush1.xpose.msra.mxu0 0.0
    %474 = vmatprep.subr.mxu0 0.0
    %475 = vmatpush1.xpose.msra.mxu0 0.0
    %476 = vmatprep.subr.mxu0 0.0
    %477 = vmatpush1.xpose.msra.mxu0 0.0
    %478 = vmatprep.subr.mxu0 0.0
    %479 = vmatpush1.xpose.msra.mxu0 0.0
    %480 = vmatprep.subr.mxu0 0.0
    %481 = vmatpush1.xpose.msra.mxu0 0.0
    %482 = vmatprep.subr.mxu0 0.0
    %483 = vmatpush1.xpose.msra.mxu0 0.0
    %484 = vmatprep.subr.mxu0 0.0
    %485 = vmatpush1.xpose.msra.mxu0 0.0
    %486 = vmatprep.subr.mxu0 0.0
    %487 = vmatpush1.xpose.msra.mxu0 0.0
    %488 = vmatprep.subr.mxu0 0.0
    %489 = vmatpush1.xpose.msra.mxu0 0.0
    %490 = vmatprep.subr.mxu0 0.0
    %491 = vmatpush1.xpose.msra.mxu0 0.0
    %492 = vmatprep.subr.mxu0 0.0
    %493 = vmatpush1.xpose.msra.mxu0 0.0
    %494 = vmatprep.subr.mxu0 0.0
    %495 = vmatpush1.xpose.msra.mxu0 0.0
    %496 = vmatprep.subr.mxu0 0.0
    %497 = vmatpush1.xpose.msra.mxu0 0.0
    %498 = vmatprep.subr.mxu0 0.0
    %499 = vmatpush1.xpose.msra.mxu0 0.0
    %500 = vmatprep.subr.mxu0 0.0
    %501 = vmatpush1.xpose.msra.mxu0 0.0
    %502 = vmatprep.subr.mxu0 0.0
    %503 = vmatpush1.xpose.msra.mxu0 0.0
    %504 = vmatprep.subr.mxu0 0.0
    %505 = vmatpush1.xpose.msra.mxu0 0.0
    %506 = vmatprep.subr.mxu0 0.0
    %507 = vmatpush1.xpose.msra.mxu0 0.0
    %508 = vmatprep.subr.mxu0 0.0
    %509 = vmatpush1.xpose.msra.mxu0 0.0
    %510 = vmatprep.subr.mxu0 0.0
    %511 = vmatpush1.xpose.msra.mxu0 0.0
    %512 = vmatprep.subr.mxu0 0.0
    %513 = vmatpush1.xpose.msra.mxu0 0.0
    %514 = vmatprep.subr.mxu0 0.0
    %515 = vmatpush1.xpose.msra.mxu0 0.0
    %516 = vmatprep.subr.mxu0 0.0
    %517 = vmatpush1.xpose.msra.mxu0 0.0
    %518 = vmatprep.subr.mxu0 0.0
    %519 = vmatpush1.xpose.msra.mxu0 0.0
    %520 = vmatprep.subr.mxu0 0.0
    %521 = vmatpush1.xpose.msra.mxu0 0.0
    %522 = vmatprep.subr.mxu0 0.0
    %523 = vmatpush1.xpose.msra.mxu0 0.0
    %524 = vmatprep.subr.mxu0 0.0
    %525 = vmatpush1.xpose.msra.mxu0 0.0
    %526 = vmatprep.subr.mxu0 0.0
    %527 = vmatpush1.xpose.msra.mxu0 0.0
    %528 = vmatprep.subr.mxu0 0.0
    %529 = vmatpush1.xpose.msra.mxu0 0.0
    %530 = vmatprep.subr.mxu0 0.0
    %531 = vmatpush1.xpose.msra.mxu0 0.0
    %532 = vmatprep.subr.mxu0 0.0
    %533 = vmatpush1.xpose.msra.mxu0 0.0
    %534 = vmatprep.mubr.f32.mxu0 0.0
    %535 = vmatmul.mubr.f32.gmra.mrb[0].mxu0 %v466
    %v536 = vpop.f32.mrb[0].mxu0
    %v537 = vadd.f32 0.0, %v536
    %v538 = vpop.f32.mrb[0].mxu0
    %539 = vdwg.mxu0
    %540 = vrot.lane.b32.xlu0 %v212, 96
    %v541 = vpop.permute.xlu0 %540
    %v542 = vsel %vm237, %v212, 0
    %v544 = vsel %vm237, %v541, 0
    %546 = vmatprep.subr.mxu0 0.0
    %547 = vmatpush1.xpose.msra.mxu0 %v544
    %548 = vmatprep.subr.mxu0 0.0
    %549 = vmatpush1.xpose.msra.mxu0 0.0
    %550 = vmatprep.subr.mxu0 0.0
    %551 = vmatpush1.xpose.msra.mxu0 0.0
    %552 = vmatprep.subr.mxu0 0.0
    %553 = vmatpush1.xpose.msra.mxu0 0.0
    %554 = vmatprep.subr.mxu0 0.0
    %555 = vmatpush1.xpose.msra.mxu0 0.0
    %556 = vmatprep.subr.mxu0 0.0
    %557 = vmatpush1.xpose.msra.mxu0 0.0
    %558 = vmatprep.subr.mxu0 0.0
    %559 = vmatpush1.xpose.msra.mxu0 0.0
    %560 = vmatprep.subr.mxu0 0.0
    %561 = vmatpush1.xpose.msra.mxu0 0.0
    %562 = vmatprep.subr.mxu0 0.0
    %563 = vmatpush1.xpose.msra.mxu0 0.0
    %564 = vmatprep.subr.mxu0 0.0
    %565 = vmatpush1.xpose.msra.mxu0 0.0
    %566 = vmatprep.subr.mxu0 0.0
    %567 = vmatpush1.xpose.msra.mxu0 0.0
    %568 = vmatprep.subr.mxu0 0.0
    %569 = vmatpush1.xpose.msra.mxu0 0.0
    %570 = vmatprep.subr.mxu0 0.0
    %571 = vmatpush1.xpose.msra.mxu0 0.0
    %572 = vmatprep.subr.mxu0 0.0
    %573 = vmatpush1.xpose.msra.mxu0 0.0
    %574 = vmatprep.subr.mxu0 0.0
    %575 = vmatpush1.xpose.msra.mxu0 0.0
    %576 = vmatprep.subr.mxu0 0.0
    %577 = vmatpush1.xpose.msra.mxu0 0.0
    %578 = vmatprep.subr.mxu0 0.0
    %579 = vmatpush1.xpose.msra.mxu0 0.0
    %580 = vmatprep.subr.mxu0 0.0
    %581 = vmatpush1.xpose.msra.mxu0 0.0
    %582 = vmatprep.subr.mxu0 0.0
    %583 = vmatpush1.xpose.msra.mxu0 0.0
    %584 = vmatprep.subr.mxu0 0.0
    %585 = vmatpush1.xpose.msra.mxu0 0.0
    %586 = vmatprep.subr.mxu0 0.0
    %587 = vmatpush1.xpose.msra.mxu0 0.0
    %588 = vmatprep.subr.mxu0 0.0
    %589 = vmatpush1.xpose.msra.mxu0 0.0
    %590 = vmatprep.subr.mxu0 0.0
    %591 = vmatpush1.xpose.msra.mxu0 0.0
    %592 = vmatprep.subr.mxu0 0.0
    %593 = vmatpush1.xpose.msra.mxu0 0.0
    %594 = vmatprep.subr.mxu0 0.0
    %595 = vmatpush1.xpose.msra.mxu0 0.0
    %596 = vmatprep.subr.mxu0 0.0
    %597 = vmatpush1.xpose.msra.mxu0 0.0
    %598 = vmatprep.subr.mxu0 0.0
    %599 = vmatpush1.xpose.msra.mxu0 0.0
    %600 = vmatprep.subr.mxu0 0.0
    %601 = vmatpush1.xpose.msra.mxu0 0.0
    %602 = vmatprep.subr.mxu0 0.0
    %603 = vmatpush1.xpose.msra.mxu0 0.0
    %604 = vmatprep.subr.mxu0 0.0
    %605 = vmatpush1.xpose.msra.mxu0 0.0
    %606 = vmatprep.subr.mxu0 0.0
    %607 = vmatpush1.xpose.msra.mxu0 0.0
    %608 = vmatprep.subr.mxu0 0.0
    %609 = vmatpush1.xpose.msra.mxu0 0.0
    %610 = vmatprep.mubr.f32.mxu0 0.0
    %611 = vmatmul.mubr.f32.gmra.mrb[0].mxu0 %v542
    %v612 = vpop.f32.mrb[0].mxu0
    %v613 = vadd.f32 0.0, %v612
    %v614 = vpop.f32.mrb[0].mxu0
    %615 = vdwg.mxu0
    %616 = vrot.lane.b32.xlu0 %v230, 96
    %v617 = vpop.permute.xlu0 %616
    %v618 = vsel %vm237, %v230, 0
    %v620 = vsel %vm237, %v617, 0
    %622 = vmatprep.subr.mxu0 0.0
    %623 = vmatpush1.xpose.msra.mxu0 %v620
    %624 = vmatprep.subr.mxu0 0.0
    %625 = vmatpush1.xpose.msra.mxu0 0.0
    %626 = vmatprep.subr.mxu0 0.0
    %627 = vmatpush1.xpose.msra.mxu0 0.0
    %628 = vmatprep.subr.mxu0 0.0
    %629 = vmatpush1.xpose.msra.mxu0 0.0
    %630 = vmatprep.subr.mxu0 0.0
    %631 = vmatpush1.xpose.msra.mxu0 0.0
    %632 = vmatprep.subr.mxu0 0.0
    %633 = vmatpush1.xpose.msra.mxu0 0.0
    %634 = vmatprep.subr.mxu0 0.0
    %635 = vmatpush1.xpose.msra.mxu0 0.0
    %636 = vmatprep.subr.mxu0 0.0
    %637 = vmatpush1.xpose.msra.mxu0 0.0
    %638 = vmatprep.subr.mxu0 0.0
    %639 = vmatpush1.xpose.msra.mxu0 0.0
    %640 = vmatprep.subr.mxu0 0.0
    %641 = vmatpush1.xpose.msra.mxu0 0.0
    %642 = vmatprep.subr.mxu0 0.0
    %643 = vmatpush1.xpose.msra.mxu0 0.0
    %644 = vmatprep.subr.mxu0 0.0
    %645 = vmatpush1.xpose.msra.mxu0 0.0
    %646 = vmatprep.subr.mxu0 0.0
    %647 = vmatpush1.xpose.msra.mxu0 0.0
    %648 = vmatprep.subr.mxu0 0.0
    %649 = vmatpush1.xpose.msra.mxu0 0.0
    %650 = vmatprep.subr.mxu0 0.0
    %651 = vmatpush1.xpose.msra.mxu0 0.0
    %652 = vmatprep.subr.mxu0 0.0
    %653 = vmatpush1.xpose.msra.mxu0 0.0
    %654 = vmatprep.subr.mxu0 0.0
    %655 = vmatpush1.xpose.msra.mxu0 0.0
    %656 = vmatprep.subr.mxu0 0.0
    %657 = vmatpush1.xpose.msra.mxu0 0.0
    %658 = vmatprep.subr.mxu0 0.0
    %659 = vmatpush1.xpose.msra.mxu0 0.0
    %660 = vmatprep.subr.mxu0 0.0
    %661 = vmatpush1.xpose.msra.mxu0 0.0
    %662 = vmatprep.subr.mxu0 0.0
    %663 = vmatpush1.xpose.msra.mxu0 0.0
    %664 = vmatprep.subr.mxu0 0.0
    %665 = vmatpush1.xpose.msra.mxu0 0.0
    %666 = vmatprep.subr.mxu0 0.0
    %667 = vmatpush1.xpose.msra.mxu0 0.0
    %668 = vmatprep.subr.mxu0 0.0
    %669 = vmatpush1.xpose.msra.mxu0 0.0
    %670 = vmatprep.subr.mxu0 0.0
    %671 = vmatpush1.xpose.msra.mxu0 0.0
    %672 = vmatprep.subr.mxu0 0.0
    %673 = vmatpush1.xpose.msra.mxu0 0.0
    %674 = vmatprep.subr.mxu0 0.0
    %675 = vmatpush1.xpose.msra.mxu0 0.0
    %676 = vmatprep.subr.mxu0 0.0
    %677 = vmatpush1.xpose.msra.mxu0 0.0
    %678 = vmatprep.subr.mxu0 0.0
    %679 = vmatpush1.xpose.msra.mxu0 0.0
    %680 = vmatprep.subr.mxu0 0.0
    %681 = vmatpush1.xpose.msra.mxu0 0.0
    %682 = vmatprep.subr.mxu0 0.0
    %683 = vmatpush1.xpose.msra.mxu0 0.0
    %684 = vmatprep.subr.mxu0 0.0
    %685 = vmatpush1.xpose.msra.mxu0 0.0
    %686 = vmatprep.mubr.f32.mxu0 0.0
    %687 = vmatmul.mubr.f32.gmra.mrb[0].mxu0 %v618
    %v688 = vpop.f32.mrb[0].mxu0
    %v689 = vadd.f32 0.0, %v688
    %v690 = vpop.f32.mrb[0].mxu0
    %691 = vdwg.mxu0
    %692 = vrot.lane.b32.xlu0 %v232, 96
    %v693 = vpop.permute.xlu0 %692
    %v694 = vsel %vm237, %v232, 0
    %v696 = vsel %vm237, %v693, 0
    %698 = vmatprep.subr.mxu0 0.0
    %699 = vmatpush1.xpose.msra.mxu0 %v696
    %700 = vmatprep.subr.mxu0 0.0
    %701 = vmatpush1.xpose.msra.mxu0 0.0
    %702 = vmatprep.subr.mxu0 0.0
    %703 = vmatpush1.xpose.msra.mxu0 0.0
    %704 = vmatprep.subr.mxu0 0.0
    %705 = vmatpush1.xpose.msra.mxu0 0.0
    %706 = vmatprep.subr.mxu0 0.0
    %707 = vmatpush1.xpose.msra.mxu0 0.0
    %708 = vmatprep.subr.mxu0 0.0
    %709 = vmatpush1.xpose.msra.mxu0 0.0
    %710 = vmatprep.subr.mxu0 0.0
    %711 = vmatpush1.xpose.msra.mxu0 0.0
    %712 = vmatprep.subr.mxu0 0.0
    %713 = vmatpush1.xpose.msra.mxu0 0.0
    %714 = vmatprep.subr.mxu0 0.0
    %715 = vmatpush1.xpose.msra.mxu0 0.0
    %716 = vmatprep.subr.mxu0 0.0
    %717 = vmatpush1.xpose.msra.mxu0 0.0
    %718 = vmatprep.subr.mxu0 0.0
    %719 = vmatpush1.xpose.msra.mxu0 0.0
    %720 = vmatprep.subr.mxu0 0.0
    %721 = vmatpush1.xpose.msra.mxu0 0.0
    %722 = vmatprep.subr.mxu0 0.0
    %723 = vmatpush1.xpose.msra.mxu0 0.0
    %724 = vmatprep.subr.mxu0 0.0
    %725 = vmatpush1.xpose.msra.mxu0 0.0
    %726 = vmatprep.subr.mxu0 0.0
    %727 = vmatpush1.xpose.msra.mxu0 0.0
    %728 = vmatprep.subr.mxu0 0.0
    %729 = vmatpush1.xpose.msra.mxu0 0.0
    %730 = vmatprep.subr.mxu0 0.0
    %731 = vmatpush1.xpose.msra.mxu0 0.0
    %732 = vmatprep.subr.mxu0 0.0
    %733 = vmatpush1.xpose.msra.mxu0 0.0
    %734 = vmatprep.subr.mxu0 0.0
    %735 = vmatpush1.xpose.msra.mxu0 0.0
    %736 = vmatprep.subr.mxu0 0.0
    %737 = vmatpush1.xpose.msra.mxu0 0.0
    %738 = vmatprep.subr.mxu0 0.0
    %739 = vmatpush1.xpose.msra.mxu0 0.0
    %740 = vmatprep.subr.mxu0 0.0
    %741 = vmatpush1.xpose.msra.mxu0 0.0
    %742 = vmatprep.subr.mxu0 0.0
    %743 = vmatpush1.xpose.msra.mxu0 0.0
    %744 = vmatprep.subr.mxu0 0.0
    %745 = vmatpush1.xpose.msra.mxu0 0.0
    %746 = vmatprep.subr.mxu0 0.0
    %747 = vmatpush1.xpose.msra.mxu0 0.0
    %748 = vmatprep.subr.mxu0 0.0
    %749 = vmatpush1.xpose.msra.mxu0 0.0
    %750 = vmatprep.subr.mxu0 0.0
    %751 = vmatpush1.xpose.msra.mxu0 0.0
    %752 = vmatprep.subr.mxu0 0.0
    %753 = vmatpush1.xpose.msra.mxu0 0.0
    %754 = vmatprep.subr.mxu0 0.0
    %755 = vmatpush1.xpose.msra.mxu0 0.0
    %756 = vmatprep.subr.mxu0 0.0
    %757 = vmatpush1.xpose.msra.mxu0 0.0
    %758 = vmatprep.subr.mxu0 0.0
    %759 = vmatpush1.xpose.msra.mxu0 0.0
    %760 = vmatprep.subr.mxu0 0.0
    %761 = vmatpush1.xpose.msra.mxu0 0.0
    %762 = vmatprep.mubr.f32.mxu0 0.0
    %763 = vmatmul.mubr.f32.gmra.mrb[0].mxu0 %v694
    %v764 = vpop.f32.mrb[0].mxu0
    %v765 = vadd.f32 0.0, %v764
    %v766 = vpop.f32.mrb[0].mxu0
    %767 = vdwg.mxu0
    %768 = vrot.lane.b32.xlu0 %v234, 96
    %v769 = vpop.permute.xlu0 %768
    %v770 = vsel %vm237, %v234, 0
    %v772 = vsel %vm237, %v769, 0
    %774 = vmatprep.subr.mxu0 0.0
    %775 = vmatpush1.xpose.msra.mxu0 %v772
    %776 = vmatprep.subr.mxu0 0.0
    %777 = vmatpush1.xpose.msra.mxu0 0.0
    %778 = vmatprep.subr.mxu0 0.0
    %779 = vmatpush1.xpose.msra.mxu0 0.0
    %780 = vmatprep.subr.mxu0 0.0
    %781 = vmatpush1.xpose.msra.mxu0 0.0
    %782 = vmatprep.subr.mxu0 0.0
    %783 = vmatpush1.xpose.msra.mxu0 0.0
    %784 = vmatprep.subr.mxu0 0.0
    %785 = vmatpush1.xpose.msra.mxu0 0.0
    %786 = vmatprep.subr.mxu0 0.0
    %787 = vmatpush1.xpose.msra.mxu0 0.0
    %788 = vmatprep.subr.mxu0 0.0
    %789 = vmatpush1.xpose.msra.mxu0 0.0
    %790 = vmatprep.subr.mxu0 0.0
    %791 = vmatpush1.xpose.msra.mxu0 0.0
    %792 = vmatprep.subr.mxu0 0.0
    %793 = vmatpush1.xpose.msra.mxu0 0.0
    %794 = vmatprep.subr.mxu0 0.0
    %795 = vmatpush1.xpose.msra.mxu0 0.0
    %796 = vmatprep.subr.mxu0 0.0
    %797 = vmatpush1.xpose.msra.mxu0 0.0
    %798 = vmatprep.subr.mxu0 0.0
    %799 = vmatpush1.xpose.msra.mxu0 0.0
    %800 = vmatprep.subr.mxu0 0.0
    %801 = vmatpush1.xpose.msra.mxu0 0.0
    %802 = vmatprep.subr.mxu0 0.0
    %803 = vmatpush1.xpose.msra.mxu0 0.0
    %804 = vmatprep.subr.mxu0 0.0
    %805 = vmatpush1.xpose.msra.mxu0 0.0
    %806 = vmatprep.subr.mxu0 0.0
    %807 = vmatpush1.xpose.msra.mxu0 0.0
    %808 = vmatprep.subr.mxu0 0.0
    %809 = vmatpush1.xpose.msra.mxu0 0.0
    %810 = vmatprep.subr.mxu0 0.0
    %811 = vmatpush1.xpose.msra.mxu0 0.0
    %812 = vmatprep.subr.mxu0 0.0
    %813 = vmatpush1.xpose.msra.mxu0 0.0
    %814 = vmatprep.subr.mxu0 0.0
    %815 = vmatpush1.xpose.msra.mxu0 0.0
    %816 = vmatprep.subr.mxu0 0.0
    %817 = vmatpush1.xpose.msra.mxu0 0.0
    %818 = vmatprep.subr.mxu0 0.0
    %819 = vmatpush1.xpose.msra.mxu0 0.0
    %820 = vmatprep.subr.mxu0 0.0
    %821 = vmatpush1.xpose.msra.mxu0 0.0
    %822 = vmatprep.subr.mxu0 0.0
    %823 = vmatpush1.xpose.msra.mxu0 0.0
    %824 = vmatprep.subr.mxu0 0.0
    %825 = vmatpush1.xpose.msra.mxu0 0.0
    %826 = vmatprep.subr.mxu0 0.0
    %827 = vmatpush1.xpose.msra.mxu0 0.0
    %828 = vmatprep.subr.mxu0 0.0
    %829 = vmatpush1.xpose.msra.mxu0 0.0
    %830 = vmatprep.subr.mxu0 0.0
    %831 = vmatpush1.xpose.msra.mxu0 0.0
    %832 = vmatprep.subr.mxu0 0.0
    %833 = vmatpush1.xpose.msra.mxu0 0.0
    %834 = vmatprep.subr.mxu0 0.0
    %835 = vmatpush1.xpose.msra.mxu0 0.0
    %836 = vmatprep.subr.mxu0 0.0
    %837 = vmatpush1.xpose.msra.mxu0 0.0
    %838 = vmatprep.mubr.f32.mxu0 0.0
    %839 = vmatmul.mubr.f32.gmra.mrb[0].mxu0 %v770
    %v840 = vpop.f32.mrb[0].mxu0
    %v841 = vadd.f32 0.0, %v840
    %v842 = vpop.f32.mrb[0].mxu0
    %843 = vdwg.mxu0
    %v844 = vmul.f32 %v309, 0.35355338
    %v845 = vmul.f32 %v385, 0.35355338
    %v846 = vmul.f32 %v461, 0.35355338
    %v847 = vmul.f32 %v537, 0.35355338
    %v848 = vmul.f32 %v613, 0.35355338
    %v849 = vmul.f32 %v689, 0.35355338
    %v850 = vmul.f32 %v765, 0.35355338
    %v851 = vmul.f32 %v841, 0.35355338
    %v854 = vlaneseq
    %v855 = vshrl.u32 %v854, 7
    %v856 = vsub.s32 0, %v855
    %v857 = vrot.slane %v219, %v856
    %v858 = vlaneseq
    %v859 = vshrl.u32 %v858, 7
    %v860 = vsub.s32 0, %v859
    %v861 = vrot.slane %v220, %v860
    %v864 = vadd.f32 %v844, %v857
    %v865 = vadd.f32 %v845, %v857
    %v866 = vadd.f32 %v846, %v857
    %v867 = vadd.f32 %v847, %v857
    %v868 = vadd.f32 %v848, %v861
    %v869 = vadd.f32 %v849, %v861
    %v870 = vadd.f32 %v850, %v861
    %v871 = vadd.f32 %v851, %v861
    %v872 = vsel %vm237, %v864, -inf
    %873 = vmax.xlane.f32.xlu0 %v872
    %v874 = vpop.xlane.xlu0 %873
    %v875 = vsel %vm237, %v865, -inf
    %876 = vmax.xlane.f32.xlu0 %v875
    %v877 = vpop.xlane.xlu0 %876
    %v878 = vsel %vm237, %v866, -inf
    %879 = vmax.xlane.f32.xlu0 %v878
    %v880 = vpop.xlane.xlu0 %879
    %v881 = vsel %vm237, %v867, -inf
    %882 = vmax.xlane.f32.xlu0 %v881
    %v883 = vpop.xlane.xlu0 %882
    %v884 = vsel %vm237, %v868, -inf
    %885 = vmax.xlane.f32.xlu0 %v884
    %v886 = vpop.xlane.xlu0 %885
    %v887 = vsel %vm237, %v869, -inf
    %888 = vmax.xlane.f32.xlu0 %v887
    %v889 = vpop.xlane.xlu0 %888
    %v890 = vsel %vm237, %v870, -inf
    %891 = vmax.xlane.f32.xlu0 %v890
    %v892 = vpop.xlane.xlu0 %891
    %v893 = vsel %vm237, %v871, -inf
    %894 = vmax.xlane.f32.xlu0 %v893
    %v895 = vpop.xlane.xlu0 %894
    %v896 = vsub.f32 %v864, %v874
    %v897 = vsub.f32 %v865, %v877
    %v898 = vsub.f32 %v866, %v880
    %v899 = vsub.f32 %v867, %v883
    %v900 = vsub.f32 %v868, %v886
    %v901 = vsub.f32 %v869, %v889
    %v902 = vsub.f32 %v870, %v892
    %v903 = vsub.f32 %v871, %v895
    %v904 = vmul.f32 %v896, 1.442695
    %v905 = vpow.pop %v904
    %v906 = vmul.f32 %v897, 1.442695
    %v907 = vpow.pop %v906
    %v908 = vmul.f32 %v898, 1.442695
    %v909 = vpow.pop %v908
    %v910 = vmul.f32 %v899, 1.442695
    %v911 = vpow.pop %v910
    %v912 = vmul.f32 %v900, 1.442695
    %v913 = vpow.pop %v912
    %v914 = vmul.f32 %v901, 1.442695
    %v915 = vpow.pop %v914
    %v916 = vmul.f32 %v902, 1.442695
    %v917 = vpow.pop %v916
    %v918 = vmul.f32 %v903, 1.442695
    %v919 = vpow.pop %v918
    %v920 = vsel %vm237, %v905, 0.0
    %921 = vadd.xlane.f32.xlu0 %v920
    %v922 = vpop.xlane.xlu0 %921
    %v923 = vsel %vm237, %v907, 0.0
    %924 = vadd.xlane.f32.xlu0 %v923
    %v925 = vpop.xlane.xlu0 %924
    %v926 = vsel %vm237, %v909, 0.0
    %927 = vadd.xlane.f32.xlu0 %v926
    %v928 = vpop.xlane.xlu0 %927
    %v929 = vsel %vm237, %v911, 0.0
    %930 = vadd.xlane.f32.xlu0 %v929
    %v931 = vpop.xlane.xlu0 %930
    %v932 = vsel %vm237, %v913, 0.0
    %933 = vadd.xlane.f32.xlu0 %v932
    %v934 = vpop.xlane.xlu0 %933
    %v935 = vsel %vm237, %v915, 0.0
    %936 = vadd.xlane.f32.xlu0 %v935
    %v937 = vpop.xlane.xlu0 %936
    %v938 = vsel %vm237, %v917, 0.0
    %939 = vadd.xlane.f32.xlu0 %v938
    %v940 = vpop.xlane.xlu0 %939
    %v941 = vsel %vm237, %v919, 0.0
    %942 = vadd.xlane.f32.xlu0 %v941
    %v943 = vpop.xlane.xlu0 %942
    %v944 = vrcp.pop %v922
    %v945 = vrcp.pop %v925
    %v946 = vrcp.pop %v928
    %v947 = vrcp.pop %v931
    %v948 = vrcp.pop %v934
    %v949 = vrcp.pop %v937
    %v950 = vrcp.pop %v940
    %v951 = vrcp.pop %v943
    %v952 = vmul.f32 %v905, %v944
    %v953 = vmul.f32 %v907, %v945
    %v954 = vmul.f32 %v909, %v946
    %v955 = vmul.f32 %v911, %v947
    %v956 = vmul.f32 %v913, %v948
    %v957 = vmul.f32 %v915, %v949
    %v958 = vmul.f32 %v917, %v950
    %v959 = vmul.f32 %v919, %v951
    %960 = vrot.lane.b32.xlu0 %v207, 64
    %v961 = vpop.permute.xlu0 %960
    %v964 = vsel %vm237, %v952, 0
    %966 = vmatprep.subr.mxu0 0.0
    %967 = vmatpush1.msra.mxu0 %v961
    %968 = vmatprep.subr.mxu0 0.0
    %969 = vmatpush1.msra.mxu0 0.0
    %970 = vmatprep.subr.mxu0 0.0
    %971 = vmatpush1.msra.mxu0 0.0
    %972 = vmatprep.subr.mxu0 0.0
    %973 = vmatpush1.msra.mxu0 0.0
    %974 = vmatprep.subr.mxu0 0.0
    %975 = vmatpush1.msra.mxu0 0.0
    %976 = vmatprep.subr.mxu0 0.0
    %977 = vmatpush1.msra.mxu0 0.0
    %978 = vmatprep.subr.mxu0 0.0
    %979 = vmatpush1.msra.mxu0 0.0
    %980 = vmatprep.subr.mxu0 0.0
    %981 = vmatpush1.msra.mxu0 0.0
    %982 = vmatprep.subr.mxu0 0.0
    %983 = vmatpush1.msra.mxu0 0.0
    %984 = vmatprep.subr.mxu0 0.0
    %985 = vmatpush1.msra.mxu0 0.0
    %986 = vmatprep.subr.mxu0 0.0
    %987 = vmatpush1.msra.mxu0 0.0
    %988 = vmatprep.subr.mxu0 0.0
    %989 = vmatpush1.msra.mxu0 0.0
    %990 = vmatprep.subr.mxu0 0.0
    %991 = vmatpush1.msra.mxu0 0.0
    %992 = vmatprep.subr.mxu0 0.0
    %993 = vmatpush1.msra.mxu0 0.0
    %994 = vmatprep.subr.mxu0 0.0
    %995 = vmatpush1.msra.mxu0 0.0
    %996 = vmatprep.subr.mxu0 0.0
    %997 = vmatpush1.msra.mxu0 0.0
    %998 = vmatprep.subr.mxu0 0.0
    %999 = vmatpush1.msra.mxu0 0.0
    %1000 = vmatprep.subr.mxu0 0.0
    %1001 = vmatpush1.msra.mxu0 0.0
    %1002 = vmatprep.subr.mxu0 0.0
    %1003 = vmatpush1.msra.mxu0 0.0
    %1004 = vmatprep.subr.mxu0 0.0
    %1005 = vmatpush1.msra.mxu0 0.0
    %1006 = vmatprep.subr.mxu0 0.0
    %1007 = vmatpush1.msra.mxu0 0.0
    %1008 = vmatprep.subr.mxu0 0.0
    %1009 = vmatpush1.msra.mxu0 0.0
    %1010 = vmatprep.subr.mxu0 0.0
    %1011 = vmatpush1.msra.mxu0 0.0
    %1012 = vmatprep.subr.mxu0 0.0
    %1013 = vmatpush1.msra.mxu0 0.0
    %1014 = vmatprep.subr.mxu0 0.0
    %1015 = vmatpush1.msra.mxu0 0.0
    %1016 = vmatprep.subr.mxu0 0.0
    %1017 = vmatpush1.msra.mxu0 0.0
    %1018 = vmatprep.subr.mxu0 0.0
    %1019 = vmatpush1.msra.mxu0 0.0
    %1020 = vmatprep.subr.mxu0 0.0
    %1021 = vmatpush1.msra.mxu0 0.0
    %1022 = vmatprep.subr.mxu0 0.0
    %1023 = vmatpush1.msra.mxu0 0.0
    %1024 = vmatprep.subr.mxu0 0.0
    %1025 = vmatpush1.msra.mxu0 0.0
    %1026 = vmatprep.subr.mxu0 0.0
    %1027 = vmatpush1.msra.mxu0 0.0
    %1028 = vmatprep.subr.mxu0 0.0
    %1029 = vmatpush1.msra.mxu0 0.0
    %1030 = vmatprep.mubr.f32.mxu0 0.0
    %1031 = vmatmul.mubr.f32.gmra.mrb[0].mxu0 %v964
    %v1032 = vpop.f32.mrb[0].mxu0
    %v1033 = vadd.f32 0.0, %v1032
    %v1034 = vpop.f32.mrb[0].mxu0
    %1035 = vdwg.mxu0
    %1036 = vrot.lane.b32.xlu0 %v223, 64
    %v1037 = vpop.permute.xlu0 %1036
    %v1040 = vsel %vm237, %v953, 0
    %1042 = vmatprep.subr.mxu0 0.0
    %1043 = vmatpush1.msra.mxu0 %v1037
    %1044 = vmatprep.subr.mxu0 0.0
    %1045 = vmatpush1.msra.mxu0 0.0
    %1046 = vmatprep.subr.mxu0 0.0
    %1047 = vmatpush1.msra.mxu0 0.0
    %1048 = vmatprep.subr.mxu0 0.0
    %1049 = vmatpush1.msra.mxu0 0.0
    %1050 = vmatprep.subr.mxu0 0.0
    %1051 = vmatpush1.msra.mxu0 0.0
    %1052 = vmatprep.subr.mxu0 0.0
    %1053 = vmatpush1.msra.mxu0 0.0
    %1054 = vmatprep.subr.mxu0 0.0
    %1055 = vmatpush1.msra.mxu0 0.0
    %1056 = vmatprep.subr.mxu0 0.0
    %1057 = vmatpush1.msra.mxu0 0.0
    %1058 = vmatprep.subr.mxu0 0.0
    %1059 = vmatpush1.msra.mxu0 0.0
    %1060 = vmatprep.subr.mxu0 0.0
    %1061 = vmatpush1.msra.mxu0 0.0
    %1062 = vmatprep.subr.mxu0 0.0
    %1063 = vmatpush1.msra.mxu0 0.0
    %1064 = vmatprep.subr.mxu0 0.0
    %1065 = vmatpush1.msra.mxu0 0.0
    %1066 = vmatprep.subr.mxu0 0.0
    %1067 = vmatpush1.msra.mxu0 0.0
    %1068 = vmatprep.subr.mxu0 0.0
    %1069 = vmatpush1.msra.mxu0 0.0
    %1070 = vmatprep.subr.mxu0 0.0
    %1071 = vmatpush1.msra.mxu0 0.0
    %1072 = vmatprep.subr.mxu0 0.0
    %1073 = vmatpush1.msra.mxu0 0.0
    %1074 = vmatprep.subr.mxu0 0.0
    %1075 = vmatpush1.msra.mxu0 0.0
    %1076 = vmatprep.subr.mxu0 0.0
    %1077 = vmatpush1.msra.mxu0 0.0
    %1078 = vmatprep.subr.mxu0 0.0
    %1079 = vmatpush1.msra.mxu0 0.0
    %1080 = vmatprep.subr.mxu0 0.0
    %1081 = vmatpush1.msra.mxu0 0.0
    %1082 = vmatprep.subr.mxu0 0.0
    %1083 = vmatpush1.msra.mxu0 0.0
    %1084 = vmatprep.subr.mxu0 0.0
    %1085 = vmatpush1.msra.mxu0 0.0
    %1086 = vmatprep.subr.mxu0 0.0
    %1087 = vmatpush1.msra.mxu0 0.0
    %1088 = vmatprep.subr.mxu0 0.0
    %1089 = vmatpush1.msra.mxu0 0.0
    %1090 = vmatprep.subr.mxu0 0.0
    %1091 = vmatpush1.msra.mxu0 0.0
    %1092 = vmatprep.subr.mxu0 0.0
    %1093 = vmatpush1.msra.mxu0 0.0
    %1094 = vmatprep.subr.mxu0 0.0
    %1095 = vmatpush1.msra.mxu0 0.0
    %1096 = vmatprep.subr.mxu0 0.0
    %1097 = vmatpush1.msra.mxu0 0.0
    %1098 = vmatprep.subr.mxu0 0.0
    %1099 = vmatpush1.msra.mxu0 0.0
    %1100 = vmatprep.subr.mxu0 0.0
    %1101 = vmatpush1.msra.mxu0 0.0
    %1102 = vmatprep.subr.mxu0 0.0
    %1103 = vmatpush1.msra.mxu0 0.0
    %1104 = vmatprep.subr.mxu0 0.0
    %1105 = vmatpush1.msra.mxu0 0.0
    %1106 = vmatprep.mubr.f32.mxu0 0.0
    %1107 = vmatmul.mubr.f32.gmra.mrb[0].mxu0 %v1040
    %v1108 = vpop.f32.mrb[0].mxu0
    %v1109 = vadd.f32 0.0, %v1108
    %v1110 = vpop.f32.mrb[0].mxu0
    %1111 = vdwg.mxu0
    %1112 = vrot.lane.b32.xlu0 %v225, 64
    %v1113 = vpop.permute.xlu0 %1112
    %v1116 = vsel %vm237, %v954, 0
    %1118 = vmatprep.subr.mxu0 0.0
    %1119 = vmatpush1.msra.mxu0 %v1113
    %1120 = vmatprep.subr.mxu0 0.0
    %1121 = vmatpush1.msra.mxu0 0.0
    %1122 = vmatprep.subr.mxu0 0.0
    %1123 = vmatpush1.msra.mxu0 0.0
    %1124 = vmatprep.subr.mxu0 0.0
    %1125 = vmatpush1.msra.mxu0 0.0
    %1126 = vmatprep.subr.mxu0 0.0
    %1127 = vmatpush1.msra.mxu0 0.0
    %1128 = vmatprep.subr.mxu0 0.0
    %1129 = vmatpush1.msra.mxu0 0.0
    %1130 = vmatprep.subr.mxu0 0.0
    %1131 = vmatpush1.msra.mxu0 0.0
    %1132 = vmatprep.subr.mxu0 0.0
    %1133 = vmatpush1.msra.mxu0 0.0
    %1134 = vmatprep.subr.mxu0 0.0
    %1135 = vmatpush1.msra.mxu0 0.0
    %1136 = vmatprep.subr.mxu0 0.0
    %1137 = vmatpush1.msra.mxu0 0.0
    %1138 = vmatprep.subr.mxu0 0.0
    %1139 = vmatpush1.msra.mxu0 0.0
    %1140 = vmatprep.subr.mxu0 0.0
    %1141 = vmatpush1.msra.mxu0 0.0
    %1142 = vmatprep.subr.mxu0 0.0
    %1143 = vmatpush1.msra.mxu0 0.0
    %1144 = vmatprep.subr.mxu0 0.0
    %1145 = vmatpush1.msra.mxu0 0.0
    %1146 = vmatprep.subr.mxu0 0.0
    %1147 = vmatpush1.msra.mxu0 0.0
    %1148 = vmatprep.subr.mxu0 0.0
    %1149 = vmatpush1.msra.mxu0 0.0
    %1150 = vmatprep.subr.mxu0 0.0
    %1151 = vmatpush1.msra.mxu0 0.0
    %1152 = vmatprep.subr.mxu0 0.0
    %1153 = vmatpush1.msra.mxu0 0.0
    %1154 = vmatprep.subr.mxu0 0.0
    %1155 = vmatpush1.msra.mxu0 0.0
    %1156 = vmatprep.subr.mxu0 0.0
    %1157 = vmatpush1.msra.mxu0 0.0
    %1158 = vmatprep.subr.mxu0 0.0
    %1159 = vmatpush1.msra.mxu0 0.0
    %1160 = vmatprep.subr.mxu0 0.0
    %1161 = vmatpush1.msra.mxu0 0.0
    %1162 = vmatprep.subr.mxu0 0.0
    %1163 = vmatpush1.msra.mxu0 0.0
    %1164 = vmatprep.subr.mxu0 0.0
    %1165 = vmatpush1.msra.mxu0 0.0
    %1166 = vmatprep.subr.mxu0 0.0
    %1167 = vmatpush1.msra.mxu0 0.0
    %1168 = vmatprep.subr.mxu0 0.0
    %1169 = vmatpush1.msra.mxu0 0.0
    %1170 = vmatprep.subr.mxu0 0.0
    %1171 = vmatpush1.msra.mxu0 0.0
    %1172 = vmatprep.subr.mxu0 0.0
    %1173 = vmatpush1.msra.mxu0 0.0
    %1174 = vmatprep.subr.mxu0 0.0
    %1175 = vmatpush1.msra.mxu0 0.0
    %1176 = vmatprep.subr.mxu0 0.0
    %1177 = vmatpush1.msra.mxu0 0.0
    %1178 = vmatprep.subr.mxu0 0.0
    %1179 = vmatpush1.msra.mxu0 0.0
    %1180 = vmatprep.subr.mxu0 0.0
    %1181 = vmatpush1.msra.mxu0 0.0
    %1182 = vmatprep.mubr.f32.mxu0 0.0
    %1183 = vmatmul.mubr.f32.gmra.mrb[0].mxu0 %v1116
    %v1184 = vpop.f32.mrb[0].mxu0
    %v1185 = vadd.f32 0.0, %v1184
    %v1186 = vpop.f32.mrb[0].mxu0
    %1187 = vdwg.mxu0
    %1188 = vrot.lane.b32.xlu0 %v227, 64
    %v1189 = vpop.permute.xlu0 %1188
    %v1192 = vsel %vm237, %v955, 0
    %1194 = vmatprep.subr.mxu0 0.0
    %1195 = vmatpush1.msra.mxu0 %v1189
    %1196 = vmatprep.subr.mxu0 0.0
    %1197 = vmatpush1.msra.mxu0 0.0
    %1198 = vmatprep.subr.mxu0 0.0
    %1199 = vmatpush1.msra.mxu0 0.0
    %1200 = vmatprep.subr.mxu0 0.0
    %1201 = vmatpush1.msra.mxu0 0.0
    %1202 = vmatprep.subr.mxu0 0.0
    %1203 = vmatpush1.msra.mxu0 0.0
    %1204 = vmatprep.subr.mxu0 0.0
    %1205 = vmatpush1.msra.mxu0 0.0
    %1206 = vmatprep.subr.mxu0 0.0
    %1207 = vmatpush1.msra.mxu0 0.0
    %1208 = vmatprep.subr.mxu0 0.0
    %1209 = vmatpush1.msra.mxu0 0.0
    %1210 = vmatprep.subr.mxu0 0.0
    %1211 = vmatpush1.msra.mxu0 0.0
    %1212 = vmatprep.subr.mxu0 0.0
    %1213 = vmatpush1.msra.mxu0 0.0
    %1214 = vmatprep.subr.mxu0 0.0
    %1215 = vmatpush1.msra.mxu0 0.0
    %1216 = vmatprep.subr.mxu0 0.0
    %1217 = vmatpush1.msra.mxu0 0.0
    %1218 = vmatprep.subr.mxu0 0.0
    %1219 = vmatpush1.msra.mxu0 0.0
    %1220 = vmatprep.subr.mxu0 0.0
    %1221 = vmatpush1.msra.mxu0 0.0
    %1222 = vmatprep.subr.mxu0 0.0
    %1223 = vmatpush1.msra.mxu0 0.0
    %1224 = vmatprep.subr.mxu0 0.0
    %1225 = vmatpush1.msra.mxu0 0.0
    %1226 = vmatprep.subr.mxu0 0.0
    %1227 = vmatpush1.msra.mxu0 0.0
    %1228 = vmatprep.subr.mxu0 0.0
    %1229 = vmatpush1.msra.mxu0 0.0
    %1230 = vmatprep.subr.mxu0 0.0
    %1231 = vmatpush1.msra.mxu0 0.0
    %1232 = vmatprep.subr.mxu0 0.0
    %1233 = vmatpush1.msra.mxu0 0.0
    %1234 = vmatprep.subr.mxu0 0.0
    %1235 = vmatpush1.msra.mxu0 0.0
    %1236 = vmatprep.subr.mxu0 0.0
    %1237 = vmatpush1.msra.mxu0 0.0
    %1238 = vmatprep.subr.mxu0 0.0
    %1239 = vmatpush1.msra.mxu0 0.0
    %1240 = vmatprep.subr.mxu0 0.0
    %1241 = vmatpush1.msra.mxu0 0.0
    %1242 = vmatprep.subr.mxu0 0.0
    %1243 = vmatpush1.msra.mxu0 0.0
    %1244 = vmatprep.subr.mxu0 0.0
    %1245 = vmatpush1.msra.mxu0 0.0
    %1246 = vmatprep.subr.mxu0 0.0
    %1247 = vmatpush1.msra.mxu0 0.0
    %1248 = vmatprep.subr.mxu0 0.0
    %1249 = vmatpush1.msra.mxu0 0.0
    %1250 = vmatprep.subr.mxu0 0.0
    %1251 = vmatpush1.msra.mxu0 0.0
    %1252 = vmatprep.subr.mxu0 0.0
    %1253 = vmatpush1.msra.mxu0 0.0
    %1254 = vmatprep.subr.mxu0 0.0
    %1255 = vmatpush1.msra.mxu0 0.0
    %1256 = vmatprep.subr.mxu0 0.0
    %1257 = vmatpush1.msra.mxu0 0.0
    %1258 = vmatprep.mubr.f32.mxu0 0.0
    %1259 = vmatmul.mubr.f32.gmra.mrb[0].mxu0 %v1192
    %v1260 = vpop.f32.mrb[0].mxu0
    %v1261 = vadd.f32 0.0, %v1260
    %v1262 = vpop.f32.mrb[0].mxu0
    %1263 = vdwg.mxu0
    %1264 = vrot.lane.b32.xlu0 %v212, 64
    %v1265 = vpop.permute.xlu0 %1264
    %v1268 = vsel %vm237, %v956, 0
    %1270 = vmatprep.subr.mxu0 0.0
    %1271 = vmatpush1.msra.mxu0 %v1265
    %1272 = vmatprep.subr.mxu0 0.0
    %1273 = vmatpush1.msra.mxu0 0.0
    %1274 = vmatprep.subr.mxu0 0.0
    %1275 = vmatpush1.msra.mxu0 0.0
    %1276 = vmatprep.subr.mxu0 0.0
    %1277 = vmatpush1.msra.mxu0 0.0
    %1278 = vmatprep.subr.mxu0 0.0
    %1279 = vmatpush1.msra.mxu0 0.0
    %1280 = vmatprep.subr.mxu0 0.0
    %1281 = vmatpush1.msra.mxu0 0.0
    %1282 = vmatprep.subr.mxu0 0.0
    %1283 = vmatpush1.msra.mxu0 0.0
    %1284 = vmatprep.subr.mxu0 0.0
    %1285 = vmatpush1.msra.mxu0 0.0
    %1286 = vmatprep.subr.mxu0 0.0
    %1287 = vmatpush1.msra.mxu0 0.0
    %1288 = vmatprep.subr.mxu0 0.0
    %1289 = vmatpush1.msra.mxu0 0.0
    %1290 = vmatprep.subr.mxu0 0.0
    %1291 = vmatpush1.msra.mxu0 0.0
    %1292 = vmatprep.subr.mxu0 0.0
    %1293 = vmatpush1.msra.mxu0 0.0
    %1294 = vmatprep.subr.mxu0 0.0
    %1295 = vmatpush1.msra.mxu0 0.0
    %1296 = vmatprep.subr.mxu0 0.0
    %1297 = vmatpush1.msra.mxu0 0.0
    %1298 = vmatprep.subr.mxu0 0.0
    %1299 = vmatpush1.msra.mxu0 0.0
    %1300 = vmatprep.subr.mxu0 0.0
    %1301 = vmatpush1.msra.mxu0 0.0
    %1302 = vmatprep.subr.mxu0 0.0
    %1303 = vmatpush1.msra.mxu0 0.0
    %1304 = vmatprep.subr.mxu0 0.0
    %1305 = vmatpush1.msra.mxu0 0.0
    %1306 = vmatprep.subr.mxu0 0.0
    %1307 = vmatpush1.msra.mxu0 0.0
    %1308 = vmatprep.subr.mxu0 0.0
    %1309 = vmatpush1.msra.mxu0 0.0
    %1310 = vmatprep.subr.mxu0 0.0
    %1311 = vmatpush1.msra.mxu0 0.0
    %1312 = vmatprep.subr.mxu0 0.0
    %1313 = vmatpush1.msra.mxu0 0.0
    %1314 = vmatprep.subr.mxu0 0.0
    %1315 = vmatpush1.msra.mxu0 0.0
    %1316 = vmatprep.subr.mxu0 0.0
    %1317 = vmatpush1.msra.mxu0 0.0
    %1318 = vmatprep.subr.mxu0 0.0
    %1319 = vmatpush1.msra.mxu0 0.0
    %1320 = vmatprep.subr.mxu0 0.0
    %1321 = vmatpush1.msra.mxu0 0.0
    %1322 = vmatprep.subr.mxu0 0.0
    %1323 = vmatpush1.msra.mxu0 0.0
    %1324 = vmatprep.subr.mxu0 0.0
    %1325 = vmatpush1.msra.mxu0 0.0
    %1326 = vmatprep.subr.mxu0 0.0
    %1327 = vmatpush1.msra.mxu0 0.0
    %1328 = vmatprep.subr.mxu0 0.0
    %1329 = vmatpush1.msra.mxu0 0.0
    %1330 = vmatprep.subr.mxu0 0.0
    %1331 = vmatpush1.msra.mxu0 0.0
    %1332 = vmatprep.subr.mxu0 0.0
    %1333 = vmatpush1.msra.mxu0 0.0
    %1334 = vmatprep.mubr.f32.mxu0 0.0
    %1335 = vmatmul.mubr.f32.gmra.mrb[0].mxu0 %v1268
    %v1336 = vpop.f32.mrb[0].mxu0
    %v1337 = vadd.f32 0.0, %v1336
    %v1338 = vpop.f32.mrb[0].mxu0
    %1339 = vdwg.mxu0
    %1340 = vrot.lane.b32.xlu0 %v230, 64
    %v1341 = vpop.permute.xlu0 %1340
    %v1344 = vsel %vm237, %v957, 0
    %1346 = vmatprep.subr.mxu0 0.0
    %1347 = vmatpush1.msra.mxu0 %v1341
    %1348 = vmatprep.subr.mxu0 0.0
    %1349 = vmatpush1.msra.mxu0 0.0
    %1350 = vmatprep.subr.mxu0 0.0
    %1351 = vmatpush1.msra.mxu0 0.0
    %1352 = vmatprep.subr.mxu0 0.0
    %1353 = vmatpush1.msra.mxu0 0.0
    %1354 = vmatprep.subr.mxu0 0.0
    %1355 = vmatpush1.msra.mxu0 0.0
    %1356 = vmatprep.subr.mxu0 0.0
    %1357 = vmatpush1.msra.mxu0 0.0
    %1358 = vmatprep.subr.mxu0 0.0
    %1359 = vmatpush1.msra.mxu0 0.0
    %1360 = vmatprep.subr.mxu0 0.0
    %1361 = vmatpush1.msra.mxu0 0.0
    %1362 = vmatprep.subr.mxu0 0.0
    %1363 = vmatpush1.msra.mxu0 0.0
    %1364 = vmatprep.subr.mxu0 0.0
    %1365 = vmatpush1.msra.mxu0 0.0
    %1366 = vmatprep.subr.mxu0 0.0
    %1367 = vmatpush1.msra.mxu0 0.0
    %1368 = vmatprep.subr.mxu0 0.0
    %1369 = vmatpush1.msra.mxu0 0.0
    %1370 = vmatprep.subr.mxu0 0.0
    %1371 = vmatpush1.msra.mxu0 0.0
    %1372 = vmatprep.subr.mxu0 0.0
    %1373 = vmatpush1.msra.mxu0 0.0
    %1374 = vmatprep.subr.mxu0 0.0
    %1375 = vmatpush1.msra.mxu0 0.0
    %1376 = vmatprep.subr.mxu0 0.0
    %1377 = vmatpush1.msra.mxu0 0.0
    %1378 = vmatprep.subr.mxu0 0.0
    %1379 = vmatpush1.msra.mxu0 0.0
    %1380 = vmatprep.subr.mxu0 0.0
    %1381 = vmatpush1.msra.mxu0 0.0
    %1382 = vmatprep.subr.mxu0 0.0
    %1383 = vmatpush1.msra.mxu0 0.0
    %1384 = vmatprep.subr.mxu0 0.0
    %1385 = vmatpush1.msra.mxu0 0.0
    %1386 = vmatprep.subr.mxu0 0.0
    %1387 = vmatpush1.msra.mxu0 0.0
    %1388 = vmatprep.subr.mxu0 0.0
    %1389 = vmatpush1.msra.mxu0 0.0
    %1390 = vmatprep.subr.mxu0 0.0
    %1391 = vmatpush1.msra.mxu0 0.0
    %1392 = vmatprep.subr.mxu0 0.0
    %1393 = vmatpush1.msra.mxu0 0.0
    %1394 = vmatprep.subr.mxu0 0.0
    %1395 = vmatpush1.msra.mxu0 0.0
    %1396 = vmatprep.subr.mxu0 0.0
    %1397 = vmatpush1.msra.mxu0 0.0
    %1398 = vmatprep.subr.mxu0 0.0
    %1399 = vmatpush1.msra.mxu0 0.0
    %1400 = vmatprep.subr.mxu0 0.0
    %1401 = vmatpush1.msra.mxu0 0.0
    %1402 = vmatprep.subr.mxu0 0.0
    %1403 = vmatpush1.msra.mxu0 0.0
    %1404 = vmatprep.subr.mxu0 0.0
    %1405 = vmatpush1.msra.mxu0 0.0
    %1406 = vmatprep.subr.mxu0 0.0
    %1407 = vmatpush1.msra.mxu0 0.0
    %1408 = vmatprep.subr.mxu0 0.0
    %1409 = vmatpush1.msra.mxu0 0.0
    %1410 = vmatprep.mubr.f32.mxu0 0.0
    %1411 = vmatmul.mubr.f32.gmra.mrb[0].mxu0 %v1344
    %v1412 = vpop.f32.mrb[0].mxu0
    %v1413 = vadd.f32 0.0, %v1412
    %v1414 = vpop.f32.mrb[0].mxu0
    %1415 = vdwg.mxu0
    %1416 = vrot.lane.b32.xlu0 %v232, 64
    %v1417 = vpop.permute.xlu0 %1416
    %v1420 = vsel %vm237, %v958, 0
    %1422 = vmatprep.subr.mxu0 0.0
    %1423 = vmatpush1.msra.mxu0 %v1417
    %1424 = vmatprep.subr.mxu0 0.0
    %1425 = vmatpush1.msra.mxu0 0.0
    %1426 = vmatprep.subr.mxu0 0.0
    %1427 = vmatpush1.msra.mxu0 0.0
    %1428 = vmatprep.subr.mxu0 0.0
    %1429 = vmatpush1.msra.mxu0 0.0
    %1430 = vmatprep.subr.mxu0 0.0
    %1431 = vmatpush1.msra.mxu0 0.0
    %1432 = vmatprep.subr.mxu0 0.0
    %1433 = vmatpush1.msra.mxu0 0.0
    %1434 = vmatprep.subr.mxu0 0.0
    %1435 = vmatpush1.msra.mxu0 0.0
    %1436 = vmatprep.subr.mxu0 0.0
    %1437 = vmatpush1.msra.mxu0 0.0
    %1438 = vmatprep.subr.mxu0 0.0
    %1439 = vmatpush1.msra.mxu0 0.0
    %1440 = vmatprep.subr.mxu0 0.0
    %1441 = vmatpush1.msra.mxu0 0.0
    %1442 = vmatprep.subr.mxu0 0.0
    %1443 = vmatpush1.msra.mxu0 0.0
    %1444 = vmatprep.subr.mxu0 0.0
    %1445 = vmatpush1.msra.mxu0 0.0
    %1446 = vmatprep.subr.mxu0 0.0
    %1447 = vmatpush1.msra.mxu0 0.0
    %1448 = vmatprep.subr.mxu0 0.0
    %1449 = vmatpush1.msra.mxu0 0.0
    %1450 = vmatprep.subr.mxu0 0.0
    %1451 = vmatpush1.msra.mxu0 0.0
    %1452 = vmatprep.subr.mxu0 0.0
    %1453 = vmatpush1.msra.mxu0 0.0
    %1454 = vmatprep.subr.mxu0 0.0
    %1455 = vmatpush1.msra.mxu0 0.0
    %1456 = vmatprep.subr.mxu0 0.0
    %1457 = vmatpush1.msra.mxu0 0.0
    %1458 = vmatprep.subr.mxu0 0.0
    %1459 = vmatpush1.msra.mxu0 0.0
    %1460 = vmatprep.subr.mxu0 0.0
    %1461 = vmatpush1.msra.mxu0 0.0
    %1462 = vmatprep.subr.mxu0 0.0
    %1463 = vmatpush1.msra.mxu0 0.0
    %1464 = vmatprep.subr.mxu0 0.0
    %1465 = vmatpush1.msra.mxu0 0.0
    %1466 = vmatprep.subr.mxu0 0.0
    %1467 = vmatpush1.msra.mxu0 0.0
    %1468 = vmatprep.subr.mxu0 0.0
    %1469 = vmatpush1.msra.mxu0 0.0
    %1470 = vmatprep.subr.mxu0 0.0
    %1471 = vmatpush1.msra.mxu0 0.0
    %1472 = vmatprep.subr.mxu0 0.0
    %1473 = vmatpush1.msra.mxu0 0.0
    %1474 = vmatprep.subr.mxu0 0.0
    %1475 = vmatpush1.msra.mxu0 0.0
    %1476 = vmatprep.subr.mxu0 0.0
    %1477 = vmatpush1.msra.mxu0 0.0
    %1478 = vmatprep.subr.mxu0 0.0
    %1479 = vmatpush1.msra.mxu0 0.0
    %1480 = vmatprep.subr.mxu0 0.0
    %1481 = vmatpush1.msra.mxu0 0.0
    %1482 = vmatprep.subr.mxu0 0.0
    %1483 = vmatpush1.msra.mxu0 0.0
    %1484 = vmatprep.subr.mxu0 0.0
    %1485 = vmatpush1.msra.mxu0 0.0
    %1486 = vmatprep.mubr.f32.mxu0 0.0
    %1487 = vmatmul.mubr.f32.gmra.mrb[0].mxu0 %v1420
    %v1488 = vpop.f32.mrb[0].mxu0
    %v1489 = vadd.f32 0.0, %v1488
    %v1490 = vpop.f32.mrb[0].mxu0
    %1491 = vdwg.mxu0
    %1492 = vrot.lane.b32.xlu0 %v234, 64
    %v1493 = vpop.permute.xlu0 %1492
    %v1496 = vsel %vm237, %v959, 0
    %1498 = vmatprep.subr.mxu0 0.0
    %1499 = vmatpush1.msra.mxu0 %v1493
    %1500 = vmatprep.subr.mxu0 0.0
    %1501 = vmatpush1.msra.mxu0 0.0
    %1502 = vmatprep.subr.mxu0 0.0
    %1503 = vmatpush1.msra.mxu0 0.0
    %1504 = vmatprep.subr.mxu0 0.0
    %1505 = vmatpush1.msra.mxu0 0.0
    %1506 = vmatprep.subr.mxu0 0.0
    %1507 = vmatpush1.msra.mxu0 0.0
    %1508 = vmatprep.subr.mxu0 0.0
    %1509 = vmatpush1.msra.mxu0 0.0
    %1510 = vmatprep.subr.mxu0 0.0
    %1511 = vmatpush1.msra.mxu0 0.0
    %1512 = vmatprep.subr.mxu0 0.0
    %1513 = vmatpush1.msra.mxu0 0.0
    %1514 = vmatprep.subr.mxu0 0.0
    %1515 = vmatpush1.msra.mxu0 0.0
    %1516 = vmatprep.subr.mxu0 0.0
    %1517 = vmatpush1.msra.mxu0 0.0
    %1518 = vmatprep.subr.mxu0 0.0
    %1519 = vmatpush1.msra.mxu0 0.0
    %1520 = vmatprep.subr.mxu0 0.0
    %1521 = vmatpush1.msra.mxu0 0.0
    %1522 = vmatprep.subr.mxu0 0.0
    %1523 = vmatpush1.msra.mxu0 0.0
    %1524 = vmatprep.subr.mxu0 0.0
    %1525 = vmatpush1.msra.mxu0 0.0
    %1526 = vmatprep.subr.mxu0 0.0
    %1527 = vmatpush1.msra.mxu0 0.0
    %1528 = vmatprep.subr.mxu0 0.0
    %1529 = vmatpush1.msra.mxu0 0.0
    %1530 = vmatprep.subr.mxu0 0.0
    %1531 = vmatpush1.msra.mxu0 0.0
    %1532 = vmatprep.subr.mxu0 0.0
    %1533 = vmatpush1.msra.mxu0 0.0
    %1534 = vmatprep.subr.mxu0 0.0
    %1535 = vmatpush1.msra.mxu0 0.0
    %1536 = vmatprep.subr.mxu0 0.0
    %1537 = vmatpush1.msra.mxu0 0.0
    %1538 = vmatprep.subr.mxu0 0.0
    %1539 = vmatpush1.msra.mxu0 0.0
    %1540 = vmatprep.subr.mxu0 0.0
    %1541 = vmatpush1.msra.mxu0 0.0
    %1542 = vmatprep.subr.mxu0 0.0
    %1543 = vmatpush1.msra.mxu0 0.0
    %1544 = vmatprep.subr.mxu0 0.0
    %1545 = vmatpush1.msra.mxu0 0.0
    %1546 = vmatprep.subr.mxu0 0.0
    %1547 = vmatpush1.msra.mxu0 0.0
    %1548 = vmatprep.subr.mxu0 0.0
    %1549 = vmatpush1.msra.mxu0 0.0
    %1550 = vmatprep.subr.mxu0 0.0
    %1551 = vmatpush1.msra.mxu0 0.0
    %1552 = vmatprep.subr.mxu0 0.0
    %1553 = vmatpush1.msra.mxu0 0.0
    %1554 = vmatprep.subr.mxu0 0.0
    %1555 = vmatpush1.msra.mxu0 0.0
    %1556 = vmatprep.subr.mxu0 0.0
    %1557 = vmatpush1.msra.mxu0 0.0
    %1558 = vmatprep.subr.mxu0 0.0
    %1559 = vmatpush1.msra.mxu0 0.0
    %1560 = vmatprep.subr.mxu0 0.0
    %1561 = vmatpush1.msra.mxu0 0.0
    %1562 = vmatprep.mubr.f32.mxu0 0.0
    %1563 = vmatmul.mubr.f32.gmra.mrb[0].mxu0 %v1496
    %v1564 = vpop.f32.mrb[0].mxu0
    %v1565 = vadd.f32 0.0, %v1564
    %v1566 = vpop.f32.mrb[0].mxu0
    %1567 = vdwg.mxu0
    %1569 = vrot.lane.b32.xlu0 %v1109, 8
    %v1570 = vpop.permute.xlu0 %1569
    %1573 = vrot.lane.b32.xlu0 %v1185, 16
    %v1574 = vpop.permute.xlu0 %1573
    %1577 = vrot.lane.b32.xlu0 %v1261, 24
    %v1578 = vpop.permute.xlu0 %1577
    %v1580 = vsel %vm237, %v1033, %v1570
    %vm1581 = vcmask 130048
    %v1582 = vsel %vm1581, %v1580, %v1574
    %vm1583 = vcmask 195584
    %v1584 = vsel %vm1583, %v1582, %v1578
    %1586 = vrot.lane.b32.xlu0 %v1413, 8
    %v1587 = vpop.permute.xlu0 %1586
    %1590 = vrot.lane.b32.xlu0 %v1489, 16
    %v1591 = vpop.permute.xlu0 %1590
    %1594 = vrot.lane.b32.xlu0 %v1565, 24
    %v1595 = vpop.permute.xlu0 %1594
    %v1597 = vsel %vm237, %v1337, %v1587
    %v1598 = vsel %vm1581, %v1597, %v1591
    %v1599 = vsel %vm1583, %v1598, %v1595
    %v1600 = vlaneseq
    %v1601 = vshrl.u32 %v1600, 7
    %v1602 = vsub.s32 0, %v1601
    %v1603 = vrot.slane %v69, %v1602
    %v1605 = vsel %vm76, %v1584, 0
    %v1608 = vsel %vm76, %v1599, 0
    %1610 = vmatprep.subr.mxu0 0.0
    %1611 = vmatpush1.msra.mxu0 %v50
    %1612 = vmatprep.subr.mxu0 0.0
    %1613 = vmatpush1.msra.mxu0 %v51
    %1614 = vmatprep.subr.mxu0 0.0
    %1615 = vmatpush1.msra.mxu0 %v52
    %1616 = vmatprep.subr.mxu0 0.0
    %1617 = vmatpush1.msra.mxu0 %v53
    %1618 = vmatprep.subr.mxu0 0.0
    %1619 = vmatpush1.msra.mxu0 0.0
    %1620 = vmatprep.subr.mxu0 0.0
    %1621 = vmatpush1.msra.mxu0 0.0
    %1622 = vmatprep.subr.mxu0 0.0
    %1623 = vmatpush1.msra.mxu0 0.0
    %1624 = vmatprep.subr.mxu0 0.0
    %1625 = vmatpush1.msra.mxu0 0.0
    %1626 = vmatprep.subr.mxu0 0.0
    %1627 = vmatpush1.msra.mxu0 0.0
    %1628 = vmatprep.subr.mxu0 0.0
    %1629 = vmatpush1.msra.mxu0 0.0
    %1630 = vmatprep.subr.mxu0 0.0
    %1631 = vmatpush1.msra.mxu0 0.0
    %1632 = vmatprep.subr.mxu0 0.0
    %1633 = vmatpush1.msra.mxu0 0.0
    %1634 = vmatprep.subr.mxu0 0.0
    %1635 = vmatpush1.msra.mxu0 0.0
    %1636 = vmatprep.subr.mxu0 0.0
    %1637 = vmatpush1.msra.mxu0 0.0
    %1638 = vmatprep.subr.mxu0 0.0
    %1639 = vmatpush1.msra.mxu0 0.0
    %1640 = vmatprep.subr.mxu0 0.0
    %1641 = vmatpush1.msra.mxu0 0.0
    %1642 = vmatprep.subr.mxu0 0.0
    %1643 = vmatpush1.msra.mxu0 0.0
    %1644 = vmatprep.subr.mxu0 0.0
    %1645 = vmatpush1.msra.mxu0 0.0
    %1646 = vmatprep.subr.mxu0 0.0
    %1647 = vmatpush1.msra.mxu0 0.0
    %1648 = vmatprep.subr.mxu0 0.0
    %1649 = vmatpush1.msra.mxu0 0.0
    %1650 = vmatprep.subr.mxu0 0.0
    %1651 = vmatpush1.msra.mxu0 0.0
    %1652 = vmatprep.subr.mxu0 0.0
    %1653 = vmatpush1.msra.mxu0 0.0
    %1654 = vmatprep.subr.mxu0 0.0
    %1655 = vmatpush1.msra.mxu0 0.0
    %1656 = vmatprep.subr.mxu0 0.0
    %1657 = vmatpush1.msra.mxu0 0.0
    %1658 = vmatprep.subr.mxu0 0.0
    %1659 = vmatpush1.msra.mxu0 0.0
    %1660 = vmatprep.subr.mxu0 0.0
    %1661 = vmatpush1.msra.mxu0 0.0
    %1662 = vmatprep.subr.mxu0 0.0
    %1663 = vmatpush1.msra.mxu0 0.0
    %1664 = vmatprep.subr.mxu0 0.0
    %1665 = vmatpush1.msra.mxu0 0.0
    %1666 = vmatprep.subr.mxu0 0.0
    %1667 = vmatpush1.msra.mxu0 0.0
    %1668 = vmatprep.subr.mxu0 0.0
    %1669 = vmatpush1.msra.mxu0 0.0
    %1670 = vmatprep.subr.mxu0 0.0
    %1671 = vmatpush1.msra.mxu0 0.0
    %1672 = vmatprep.subr.mxu0 0.0
    %1673 = vmatpush1.msra.mxu0 0.0
    %1674 = vmatprep.mubr.f32.mxu0 0.0
    %1675 = vmatmul.mubr.f32.gmra.mrb[0].mxu0 %v1605
    %v1676 = vpop.f32.mrb[0].mxu0
    %v1677 = vadd.f32 %v1603, %v1676
    %v1678 = vpop.f32.mrb[0].mxu0
    %1679 = vmatprep.mubr.f32.mxu0 0.0
    %1680 = vmatmul.mubr.f32.gmra.mrb[0].mxu0 %v1608
    %v1681 = vpop.f32.mrb[0].mxu0
    %v1682 = vadd.f32 %v1603, %v1681
    %v1683 = vpop.f32.mrb[0].mxu0
    %1684 = vdwg.mxu0
    %v1685 = vadd.f32 %v74, %v1677
    %v1686 = vadd.f32 %v75, %v1682
    %v1687 = vsel %vm76, %v1685, 0.0
    %1688 = vadd.xlane.f32.xlu0 %v1687
    %v1689 = vpop.xlane.xlu0 %1688
    %v1690 = vsel %vm76, %v1686, 0.0
    %1691 = vadd.xlane.f32.xlu0 %v1690
    %v1692 = vpop.xlane.xlu0 %1691
    %v1693 = vmul.f32 %v1689, %v83
    %v1694 = vmul.f32 %v1692, %v83
    %v1695 = vsub.f32 %v1685, %v1693
    %v1696 = vsub.f32 %v1686, %v1694
    %v1697 = vmul.f32 %v1695, %v1695
    %v1698 = vmul.f32 %v1696, %v1696
    %v1699 = vsel %vm76, %v1697, 0.0
    %1700 = vadd.xlane.f32.xlu0 %v1699
    %v1701 = vpop.xlane.xlu0 %1700
    %v1702 = vsel %vm76, %v1698, 0.0
    %1703 = vadd.xlane.f32.xlu0 %v1702
    %v1704 = vpop.xlane.xlu0 %1703
    %v1705 = vmul.f32 %v1701, 0.032258064
    %v1706 = vmul.f32 %v1704, 0.032258064
    %v1707 = vrsqrt.pop %v1705
    %v1708 = vmul.f32 %v1705, %v1707
    %vm1709 = vcmp.eq.f32.partialorder %v1705, inf
    %v1710 = vsel %vm1709, %v1705, %v1708
    %vm1711 = vcmp.eq.f32.partialorder %v1705, 0.0
    %v1712 = vand.u32 %v1705, 2147483648
    %v1713 = vsel %vm1711, %v1712, %v1710
    %v1714 = vrsqrt.pop %v1706
    %v1715 = vmul.f32 %v1706, %v1714
    %vm1716 = vcmp.eq.f32.partialorder %v1706, inf
    %v1717 = vsel %vm1716, %v1706, %v1715
    %vm1718 = vcmp.eq.f32.partialorder %v1706, 0.0
    %v1719 = vand.u32 %v1706, 2147483648
    %v1720 = vsel %vm1718, %v1719, %v1717
    %v1721 = vadd.f32 %v1713, 1e-06
    %v1722 = vadd.f32 %v1720, 1e-06
    %v1723 = vrcp.pop %v1721
    %v1724 = vrcp.pop %v1722
    %v1725 = vlaneseq
    %v1726 = vshrl.u32 %v1725, 7
    %v1727 = vsub.s32 0, %v1726
    %v1728 = vrot.slane %v70, %v1727
    %v1729 = vmul.f32 %v1728, %v1695
    %v1730 = vmul.f32 %v1728, %v1696
    %v1731 = vmul.f32 %v1729, %v1723
    %v1732 = vmul.f32 %v1730, %v1724
    %v1733 = vlaneseq
    %v1734 = vshrl.u32 %v1733, 7
    %v1735 = vsub.s32 0, %v1734
    %v1736 = vrot.slane %v71, %v1735
    %v1737 = vadd.f32 %v1731, %v1736
    %v1738 = vadd.f32 %v1732, %v1736
    %v1739 = vlaneseq
    %v1740 = vshrl.u32 %v1739, 7
    %v1741 = vsub.s32 0, %v1740
    %v1742 = vrot.slane %v72, %v1741
    %v1744 = vsel %vm76, %v1737, 0
    %v1747 = vsel %vm76, %v1738, 0
    %1749 = vmatprep.subr.mxu0 0.0
    %1750 = vmatpush1.msra.mxu0 %v54
    %1751 = vmatprep.subr.mxu0 0.0
    %1752 = vmatpush1.msra.mxu0 %v55
    %1753 = vmatprep.subr.mxu0 0.0
    %1754 = vmatpush1.msra.mxu0 %v56
    %1755 = vmatprep.subr.mxu0 0.0
    %1756 = vmatpush1.msra.mxu0 %v57
    %1757 = vmatprep.subr.mxu0 0.0
    %1758 = vmatpush1.msra.mxu0 0.0
    %1759 = vmatprep.subr.mxu0 0.0
    %1760 = vmatpush1.msra.mxu0 0.0
    %1761 = vmatprep.subr.mxu0 0.0
    %1762 = vmatpush1.msra.mxu0 0.0
    %1763 = vmatprep.subr.mxu0 0.0
    %1764 = vmatpush1.msra.mxu0 0.0
    %1765 = vmatprep.subr.mxu0 0.0
    %1766 = vmatpush1.msra.mxu0 0.0
    %1767 = vmatprep.subr.mxu0 0.0
    %1768 = vmatpush1.msra.mxu0 0.0
    %1769 = vmatprep.subr.mxu0 0.0
    %1770 = vmatpush1.msra.mxu0 0.0
    %1771 = vmatprep.subr.mxu0 0.0
    %1772 = vmatpush1.msra.mxu0 0.0
    %1773 = vmatprep.subr.mxu0 0.0
    %1774 = vmatpush1.msra.mxu0 0.0
    %1775 = vmatprep.subr.mxu0 0.0
    %1776 = vmatpush1.msra.mxu0 0.0
    %1777 = vmatprep.subr.mxu0 0.0
    %1778 = vmatpush1.msra.mxu0 0.0
    %1779 = vmatprep.subr.mxu0 0.0
    %1780 = vmatpush1.msra.mxu0 0.0
    %1781 = vmatprep.subr.mxu0 0.0
    %1782 = vmatpush1.msra.mxu0 0.0
    %1783 = vmatprep.subr.mxu0 0.0
    %1784 = vmatpush1.msra.mxu0 0.0
    %1785 = vmatprep.subr.mxu0 0.0
    %1786 = vmatpush1.msra.mxu0 0.0
    %1787 = vmatprep.subr.mxu0 0.0
    %1788 = vmatpush1.msra.mxu0 0.0
    %1789 = vmatprep.subr.mxu0 0.0
    %1790 = vmatpush1.msra.mxu0 0.0
    %1791 = vmatprep.subr.mxu0 0.0
    %1792 = vmatpush1.msra.mxu0 0.0
    %1793 = vmatprep.subr.mxu0 0.0
    %1794 = vmatpush1.msra.mxu0 0.0
    %1795 = vmatprep.subr.mxu0 0.0
    %1796 = vmatpush1.msra.mxu0 0.0
    %1797 = vmatprep.subr.mxu0 0.0
    %1798 = vmatpush1.msra.mxu0 0.0
    %1799 = vmatprep.subr.mxu0 0.0
    %1800 = vmatpush1.msra.mxu0 0.0
    %1801 = vmatprep.subr.mxu0 0.0
    %1802 = vmatpush1.msra.mxu0 0.0
    %1803 = vmatprep.subr.mxu0 0.0
    %1804 = vmatpush1.msra.mxu0 0.0
    %1805 = vmatprep.subr.mxu0 0.0
    %1806 = vmatpush1.msra.mxu0 0.0
    %1807 = vmatprep.subr.mxu0 0.0
    %1808 = vmatpush1.msra.mxu0 0.0
    %1809 = vmatprep.subr.mxu0 0.0
    %1810 = vmatpush1.msra.mxu0 0.0
    %1811 = vmatprep.subr.mxu0 0.0
    %1812 = vmatpush1.msra.mxu0 0.0
    %1813 = vmatprep.mubr.f32.mxu0 0.0
    %1814 = vmatmul.mubr.f32.gmra.mrb[0].mxu0 %v1744
    %v1815 = vpop.f32.mrb[0].mxu0
    %v1816 = vadd.f32 %v1742, %v1815
    %v1817 = vpop.f32.mrb[0].mxu0
    %1818 = vmatprep.mubr.f32.mxu0 0.0
    %1819 = vmatmul.mubr.f32.gmra.mrb[0].mxu0 %v1747
    %v1820 = vpop.f32.mrb[0].mxu0
    %v1821 = vadd.f32 %v1742, %v1820
    %v1822 = vpop.f32.mrb[0].mxu0
    %1823 = vdwg.mxu0
    %v1824 = vmax.f32 %v1816, 0.0
    %v1825 = vmax.f32 %v1821, 0.0
    %v1826 = vlaneseq
    %v1827 = vshrl.u32 %v1826, 7
    %v1828 = vsub.s32 0, %v1827
    %v1829 = vrot.slane %v73, %v1828
    %vm1830 = vcmask 523264
    %v1832 = vsel %vm1830, %v1824, 0
    %v1835 = vsel %vm1830, %v1825, 0
    %1837 = vmatprep.subr.mxu0 0.0
    %1838 = vmatpush1.msra.mxu0 %v58
    %1839 = vmatprep.subr.mxu0 0.0
    %1840 = vmatpush1.msra.mxu0 %v59
    %1841 = vmatprep.subr.mxu0 0.0
    %1842 = vmatpush1.msra.mxu0 %v60
    %1843 = vmatprep.subr.mxu0 0.0
    %1844 = vmatpush1.msra.mxu0 %v61
    %1845 = vmatprep.subr.mxu0 0.0
    %1846 = vmatpush1.msra.mxu0 %v62
    %1847 = vmatprep.subr.mxu0 0.0
    %1848 = vmatpush1.msra.mxu0 %v63
    %1849 = vmatprep.subr.mxu0 0.0
    %1850 = vmatpush1.msra.mxu0 %v64
    %1851 = vmatprep.subr.mxu0 0.0
    %1852 = vmatpush1.msra.mxu0 %v65
    %1853 = vmatprep.subr.mxu0 0.0
    %1854 = vmatpush1.msra.mxu0 0.0
    %1855 = vmatprep.subr.mxu0 0.0
    %1856 = vmatpush1.msra.mxu0 0.0
    %1857 = vmatprep.subr.mxu0 0.0
    %1858 = vmatpush1.msra.mxu0 0.0
    %1859 = vmatprep.subr.mxu0 0.0
    %1860 = vmatpush1.msra.mxu0 0.0
    %1861 = vmatprep.subr.mxu0 0.0
    %1862 = vmatpush1.msra.mxu0 0.0
    %1863 = vmatprep.subr.mxu0 0.0
    %1864 = vmatpush1.msra.mxu0 0.0
    %1865 = vmatprep.subr.mxu0 0.0
    %1866 = vmatpush1.msra.mxu0 0.0
    %1867 = vmatprep.subr.mxu0 0.0
    %1868 = vmatpush1.msra.mxu0 0.0
    %1869 = vmatprep.subr.mxu0 0.0
    %1870 = vmatpush1.msra.mxu0 0.0
    %1871 = vmatprep.subr.mxu0 0.0
    %1872 = vmatpush1.msra.mxu0 0.0
    %1873 = vmatprep.subr.mxu0 0.0
    %1874 = vmatpush1.msra.mxu0 0.0
    %1875 = vmatprep.subr.mxu0 0.0
    %1876 = vmatpush1.msra.mxu0 0.0
    %1877 = vmatprep.subr.mxu0 0.0
    %1878 = vmatpush1.msra.mxu0 0.0
    %1879 = vmatprep.subr.mxu0 0.0
    %1880 = vmatpush1.msra.mxu0 0.0
    %1881 = vmatprep.subr.mxu0 0.0
    %1882 = vmatpush1.msra.mxu0 0.0
    %1883 = vmatprep.subr.mxu0 0.0
    %1884 = vmatpush1.msra.mxu0 0.0
    %1885 = vmatprep.subr.mxu0 0.0
    %1886 = vmatpush1.msra.mxu0 0.0
    %1887 = vmatprep.subr.mxu0 0.0
    %1888 = vmatpush1.msra.mxu0 0.0
    %1889 = vmatprep.subr.mxu0 0.0
    %1890 = vmatpush1.msra.mxu0 0.0
    %1891 = vmatprep.subr.mxu0 0.0
    %1892 = vmatpush1.msra.mxu0 0.0
    %1893 = vmatprep.subr.mxu0 0.0
    %1894 = vmatpush1.msra.mxu0 0.0
    %1895 = vmatprep.subr.mxu0 0.0
    %1896 = vmatpush1.msra.mxu0 0.0
    %1897 = vmatprep.subr.mxu0 0.0
    %1898 = vmatpush1.msra.mxu0 0.0
    %1899 = vmatprep.subr.mxu0 0.0
    %1900 = vmatpush1.msra.mxu0 0.0
    %1901 = vmatprep.mubr.f32.mxu0 0.0
    %1902 = vmatmul.mubr.f32.gmra.mrb[0].mxu0 %v1832
    %v1903 = vpop.f32.mrb[0].mxu0
    %v1904 = vadd.f32 %v1829, %v1903
    %v1905 = vpop.f32.mrb[0].mxu0
    %1906 = vmatprep.mubr.f32.mxu0 0.0
    %1907 = vmatmul.mubr.f32.gmra.mrb[0].mxu0 %v1835
    %v1908 = vpop.f32.mrb[0].mxu0
    %v1909 = vadd.f32 %v1829, %v1908
    %v1910 = vpop.f32.mrb[0].mxu0
    %1911 = vdwg.mxu0
    %v1912 = vadd.f32 %v1685, %v1904
    %v1913 = vadd.f32 %v1686, %v1909
    %1914 = vst.msk [vmem:[#allocation7] sm:$0xff] %vm76, %v1912
    %1915 = vst.msk [vmem:[#allocation7 + $0x8] sm:$0xff] %vm76, %v1913
    // Predicated region
    $region26: #{tpu_custom_call.1} parent=1 // pred_check
      _
    $region27: #{tpu_custom_call.1} parent=1 // pred_check_branch
      %1917 = sbr.rel (0) target = $region29
    $region28: #{tpu_custom_call.1} parent=1 // pred_region
      %s1919 = ssub.s32 256, 256
      %1920 = vsyncadd [#allocation4], %s1919
      %s1921 = sshll.u32 [#allocation7], 4
      %s1922 = int_to_ptr.vmem [resolvable:$true] %s1921
      %1927 = dma.vmem_to_hbm [thread:$0]  %s1922, 256, %s4, [#allocation4], 128, 128, 8
    $region29: #{tpu_custom_call.1} parent=1 // pred_fallthru
      _
    // Predicated region
    $region30: #{tpu_custom_call.1} parent=1 // pred_check
      _
    $region31: #{tpu_custom_call.1} parent=1 // pred_check_branch
      %1929 = sbr.rel (0) target = $region33
    $region32: #{tpu_custom_call.1} parent=1 // pred_region
      %1930 = dma.done [#allocation4], 256
    $region33: #{tpu_custom_call.1} parent=1 // pred_fallthru
      _
    %1931 = vsyncpa [#allocation3], 1
    %1932 = vsyncpa [#allocation6], 1
    %1933 = vsyncpa [#allocation4], 1

</llo_original>
